<compile_context>
chip_gen: v6e
topology: v6e:2x2x1
jax: 0.10.0
libtpu: 0.0.40
codegen_flags: <defaults>
</compile_context>

<pallas_src>
import jax
import jax.numpy as jnp
import numpy as np
from jax.experimental import pallas as pl
from jax.experimental.pallas import tpu as pltpu


# --------------------------------------------------------------------------
# Pallas kernel: stacked LSTM cell (seq len 1) + dot attention + softmax
#                + context bmm + O-tiled classifier with online logsumexp.
# Grid: (num_O_tiles,)  -- "arbitrary" (sequential logsumexp carry).
# --------------------------------------------------------------------------
def _luong_step_kernel(
    emb_ref,     # (1, H)         embedded (eval-mode-dropout) input token
    h0_ref,      # (L, H)         previous hidden state (flattened)
    c0_ref,      # (L, H)         previous cell state   (flattened)
    w_ref,       # (L, 2H, 4H)    fused per-layer gate weights ([x;h] @ W)
    b_ref,       # (L, 4H)        per-layer combined bias (b_ih + b_hh)
    enc_ref,     # (S, H)         encoder outputs (single copy)
    wc_ref,      # (2H, O_tile)   classifier weight tile (pre-transposed)
    bc_ref,      # (1, O_tile)    classifier bias tile
    logits_ref,  # (1, O_tile)    raw logits tile (lane-dense store)
    lse_ref,     # (1, 1)         logsumexp over all O (written at last tile)
    hn_ref,      # (L, H)         new hidden state (aliased onto h0)
    cn_ref,      # (L, H)         new cell state   (aliased onto c0)
    attn_ref,    # (1, S)         raw attention scores (attention_weights)
    cat_sc,      # (1, 2H) VMEM   [lstm_out ; ctx] carried across O tiles
    m_sc,        # (1, 1)  VMEM   running max of logits
    s_sc,        # (1, 1)  VMEM   running sum of exp(logits - m)
):
    j = pl.program_id(0)
    L, H = h0_ref.shape

    # ---- LSTM stack + attention: run once, on the first O tile ------------
    @pl.when(j == 0)
    def _():
        # Full up-front load keeps the h0->hn / c0->cn aliasing
        # read-before-write even with per-row stores below.
        h_prev_all = h0_ref[...]                            # (L, H)
        c_prev_all = c0_ref[...]                            # (L, H)
        x = emb_ref[...]                                    # (1, H)

        for l in range(L):                                  # strictly serial
            h_prev = h_prev_all[l:l + 1, :]                 # (1, H)
            c_prev = c_prev_all[l:l + 1, :]                 # (1, H)
            xh = jnp.concatenate([x, h_prev], axis=-1)      # (1, 2H)
            # One fused (1,2H)@(2H,4H) gate matmul (PyTorch order i,f,g,o).
            gates = (jnp.dot(xh.astype(w_ref.dtype), w_ref[l],
                             preferred_element_type=jnp.float32)
                     + b_ref[l:l + 1, :])                   # (1, 4H)
            i_g = jax.nn.sigmoid(gates[:, 0 * H:1 * H])
            f_g = jax.nn.sigmoid(gates[:, 1 * H:2 * H])
            g_g = jnp.tanh(gates[:, 2 * H:3 * H])
            o_g = jax.nn.sigmoid(gates[:, 3 * H:4 * H])

            c_new = f_g * c_prev + i_g * g_g
            h_new = o_g * jnp.tanh(c_new)
            hn_ref[l:l + 1, :] = h_new                      # per-row store
            cn_ref[l:l + 1, :] = c_new
            x = h_new                                       # feed next layer

        lstm_out = x                                        # (1, H)

        # Luong dot attention: contract on H (no duplicated enc_T input).
        enc = enc_ref[...]                                  # (S, H)
        scores = jax.lax.dot_general(
            lstm_out, enc, (((1,), (1,)), ((), ())),
            preferred_element_type=jnp.float32)             # (1, S)
        attn_ref[...] = scores                              # raw scores

        m = jnp.max(scores, axis=-1, keepdims=True)
        e = jnp.exp(scores - m)
        align = e / jnp.sum(e, axis=-1, keepdims=True)      # exact softmax
        ctx = jnp.dot(align, enc,
                      preferred_element_type=jnp.float32)   # (1, H)

        cat_sc[...] = jnp.concatenate([lstm_out, ctx], axis=-1)  # (1, 2H)
        m_sc[...] = jnp.full(m_sc.shape, -jnp.inf, m_sc.dtype)
        s_sc[...] = jnp.zeros(s_sc.shape, s_sc.dtype)

    # ---- O-tiled classifier + online logsumexp (every tile) ---------------
    logits_t = (jnp.dot(cat_sc[...].astype(wc_ref.dtype), wc_ref[...],
                        preferred_element_type=jnp.float32)
                + bc_ref[...])                              # (1, O_tile)
    logits_ref[...] = logits_t                              # lane-dense store

    m_prev = m_sc[...]
    m_new = jnp.maximum(m_prev, jnp.max(logits_t, axis=-1, keepdims=True))
    s_sc[...] = (s_sc[...] * jnp.exp(m_prev - m_new)
                 + jnp.sum(jnp.exp(logits_t - m_new), axis=-1, keepdims=True))
    m_sc[...] = m_new

    @pl.when(j == pl.num_programs(0) - 1)
    def _():
        lse_ref[...] = m_sc[...] + jnp.log(s_sc[...])


# --------------------------------------------------------------------------
# One-time parameter / encoder repacking (hoisted out of the per-token path).
# --------------------------------------------------------------------------
def pack_params(params, weight_dtype=jnp.float32):
    """Repack PyTorch-layout parameters into kernel-friendly layouts.

    weight_dtype=jnp.bfloat16 halves the dominant HBM weight stream on
    v5e/v6e/v7x (MXU still accumulates in f32).  int8 classifier weights are
    a further option on v5e/v6e only (v7x MXU is fp8-only).  Kept f32 here
    for tight correctness tolerances at toy sizes.
    """
    L, fourH, H = params["w_ih"].shape
    O = params["cls_b"].shape[0]

    # (L,4H,H) -> transpose to contraction-major (L,H,4H); fuse [x;h] axis.
    w_ih_t = jnp.transpose(params["w_ih"], (0, 2, 1))       # (L, H, 4H)
    w_hh_t = jnp.transpose(params["w_hh"], (0, 2, 1))       # (L, H, 4H)
    w_gates = jnp.concatenate([w_ih_t, w_hh_t], axis=1)     # (L, 2H, 4H)
    b_gates = params["b_ih"] + params["b_hh"]               # (L, 4H)

    return dict(
        embedding=params["embedding"].astype(jnp.float32),
        w_gates=w_gates.astype(weight_dtype),
        b_gates=b_gates.astype(jnp.float32),
        wc=params["cls_w"].T.astype(weight_dtype),          # (2H, O)
        bc=params["cls_b"].reshape(1, O).astype(jnp.float32),
        L=L, H=H, O=O,
    )


def pack_encoder(encoder_outputs):
    """Per-sequence (NOT per-token) encoder repacking: (1,S,H) -> (S,H)."""
    S, H = encoder_outputs.shape[1], encoder_outputs.shape[2]
    return encoder_outputs.reshape(S, H).astype(jnp.float32)


def make_luong_step(packed, o_tile=None):
    """Build a jitted single-decoder-step callable closing over packed params."""
    L, H, O = packed["L"], packed["H"], packed["O"]
    embedding = packed["embedding"]
    w_gates, b_gates = packed["w_gates"], packed["b_gates"]
    wc, bc = packed["wc"], packed["bc"]

    if o_tile is None:
        o_tile = O
    assert O % o_tile == 0, "O must be divisible by the classifier tile"
    assert o_tile == O or o_tile % 128 == 0, "O tile must be lane-dense"
    n_tiles = O // o_tile
    # TODO(synk): on v7x (64 MiB VMEM) size o_tile so 2x(2H*o_tile*bytes)
    #             + enc/gates fit the scoped limit (vmem_limit_bytes).

    def step(token_id, hidden, enc):
        h0, c0 = hidden                      # each (L, H)
        S = enc.shape[0]

        # Glue: embedding lookup; dropout is eval-mode identity.
        emb = embedding[token_id].reshape(1, H)

        grid_spec = pltpu.PrefetchScalarGridSpec(
            num_scalar_prefetch=0,
            grid=(n_tiles,),
            in_specs=[
                pl.BlockSpec((1, H), lambda j: (0, 0)),             # emb
                pl.BlockSpec((L, H), lambda j: (0, 0)),             # h0
                pl.BlockSpec((L, H), lambda j: (0, 0)),             # c0
                pl.BlockSpec((L, 2 * H, 4 * H), lambda j: (0, 0, 0)),  # w
                pl.BlockSpec((L, 4 * H), lambda j: (0, 0)),         # b
                pl.BlockSpec((S, H), lambda j: (0, 0)),             # enc
                pl.BlockSpec((2 * H, o_tile), lambda j: (0, j)),    # wc tile
                pl.BlockSpec((1, o_tile), lambda j: (0, j)),        # bc tile
            ],
            out_specs=[
                pl.BlockSpec((1, o_tile), lambda j: (0, j)),        # logits
                pl.BlockSpec((1, 1), lambda j: (0, 0)),             # lse
                pl.BlockSpec((L, H), lambda j: (0, 0)),             # hn
                pl.BlockSpec((L, H), lambda j: (0, 0)),             # cn
                pl.BlockSpec((1, S), lambda j: (0, 0)),             # attn
            ],
            scratch_shapes=[
                pltpu.VMEM((1, 2 * H), jnp.float32),                # cat
                pltpu.VMEM((1, 1), jnp.float32),                    # m
                pltpu.VMEM((1, 1), jnp.float32),                    # s
            ],
        )

        logits, lse, hn, cn, attn = pl.pallas_call(
            _luong_step_kernel,
            grid_spec=grid_spec,
            out_shape=(
                jax.ShapeDtypeStruct((1, O), jnp.float32),
                jax.ShapeDtypeStruct((1, 1), jnp.float32),
                jax.ShapeDtypeStruct((L, H), jnp.float32),
                jax.ShapeDtypeStruct((L, H), jnp.float32),
                jax.ShapeDtypeStruct((1, S), jnp.float32),
            ),
            # Carry the LSTM state in place across decode steps.
            input_output_aliases={1: 2, 2: 3},
            compiler_params=pltpu.CompilerParams(
                dimension_semantics=("arbitrary",)),
        )(emb, h0, c0, w_gates, b_gates, enc, wc, bc)

        # Final log-softmax normalization (trivial (1,O) op; lse computed
        # in-kernel with online logsumexp over the O tiles).
        out = logits - lse
        return out, (hn, cn), attn.reshape(1, 1, S)

    return jax.jit(step)


# --------------------------------------------------------------------------
# Pure-JAX reference (mirrors the PyTorch math) for correctness checking.
# --------------------------------------------------------------------------
def reference_forward(token_id, hidden, encoder_outputs, params):
    h0, c0 = hidden
    L, _, H = h0.shape
    x = params["embedding"][token_id].reshape(1, H)
    hn, cn = [], []
    for l in range(L):
        gates = (x @ params["w_ih"][l].T + params["b_ih"][l]
                 + h0[l] @ params["w_hh"][l].T + params["b_hh"][l])
        i_g = jax.nn.sigmoid(gates[:, 0 * H:1 * H])
        f_g = jax.nn.sigmoid(gates[:, 1 * H:2 * H])
        g_g = jnp.tanh(gates[:, 2 * H:3 * H])
        o_g = jax.nn.sigmoid(gates[:, 3 * H:4 * H])
        c_new = f_g * c0[l] + i_g * g_g
        h_new = o_g * jnp.tanh(c_new)
        hn.append(h_new)
        cn.append(c_new)
        x = h_new
    lstm_out = x                                           # (1, H)
    enc = encoder_outputs[0]                               # (S, H)
    scores = lstm_out @ enc.T                              # (1, S)
    align = jax.nn.softmax(scores, axis=-1)
    ctx = align @ enc                                      # (1, H)
    cat = jnp.concatenate([lstm_out, ctx], axis=-1)        # (1, 2H)
    logits = cat @ params["cls_w"].T + params["cls_b"]
    out = jax.nn.log_softmax(logits, axis=1)
    return out, (jnp.stack(hn), jnp.stack(cn)), scores.reshape(1, 1, -1)


if __name__ == "__main__":
    # small, module-consistent shapes (vocab big enough to exercise O-tiling)
    H = 32          # hidden_size
    O = 512         # output_size (= embedding vocab size)
    L = 2           # num_layers
    S = 8           # encoder sequence length
    O_TILE = 256    # lane-dense classifier tile -> grid of 2

    key = jax.random.PRNGKey(0)
    ks = jax.random.split(key, 10)

    params = {
        "embedding": 0.1 * jax.random.normal(ks[0], (O, H), jnp.float32),
        "w_ih": 0.1 * jax.random.normal(ks[1], (L, 4 * H, H), jnp.float32),
        "w_hh": 0.1 * jax.random.normal(ks[2], (L, 4 * H, H), jnp.float32),
        "b_ih": 0.1 * jax.random.normal(ks[3], (L, 4 * H), jnp.float32),
        "b_hh": 0.1 * jax.random.normal(ks[4], (L, 4 * H), jnp.float32),
        "cls_w": 0.1 * jax.random.normal(ks[5], (O, 2 * H), jnp.float32),
        "cls_b": 0.1 * jax.random.normal(ks[6], (O,), jnp.float32),
    }

    token_id = jnp.array(3, dtype=jnp.int32)
    h0 = 0.1 * jax.random.normal(ks[7], (L, 1, H), jnp.float32)
    c0 = 0.1 * jax.random.normal(ks[8], (L, 1, H), jnp.float32)
    encoder_outputs = 0.1 * jax.random.normal(ks[9], (1, S, H), jnp.float32)

    # One-time packing (weights per model, encoder per sequence).
    packed = pack_params(params)
    step = make_luong_step(packed, o_tile=O_TILE)
    enc = pack_encoder(encoder_outputs)

    out, (hn, cn), attn = step(
        token_id, (h0.reshape(L, H), c0.reshape(L, H)), enc)
    jax.block_until_ready((out, hn, cn, attn))

    r_out, (r_hn, r_cn), r_attn = reference_forward(
        token_id, (h0, c0), encoder_outputs, params)

    np.testing.assert_allclose(np.asarray(out), np.asarray(r_out),
                               atol=1e-4, rtol=1e-4)
    np.testing.assert_allclose(np.asarray(hn), np.asarray(r_hn).reshape(L, H),
                               atol=1e-5, rtol=1e-5)
    np.testing.assert_allclose(np.asarray(cn), np.asarray(r_cn).reshape(L, H),
                               atol=1e-5, rtol=1e-5)
    np.testing.assert_allclose(np.asarray(attn), np.asarray(r_attn),
                               atol=1e-5, rtol=1e-5)

    print("KERNEL_OK")
</pallas_src>

<mosaic_0001>
module attributes {stable_mosaic.version = 11 : i64} {
  func.func @_luong_step_kernel(%arg0: i32, %arg1: memref<1x32xf32, #tpu.memory_space<vmem>>, %arg2: memref<2x32xf32, #tpu.memory_space<vmem>>, %arg3: memref<2x32xf32, #tpu.memory_space<vmem>>, %arg4: memref<2x64x128xf32, #tpu.memory_space<vmem>>, %arg5: memref<2x128xf32, #tpu.memory_space<vmem>>, %arg6: memref<8x32xf32, #tpu.memory_space<vmem>>, %arg7: memref<64x256xf32, #tpu.memory_space<vmem>>, %arg8: memref<1x256xf32, #tpu.memory_space<vmem>>, %arg9: memref<1x256xf32, #tpu.memory_space<vmem>>, %arg10: memref<1x1xf32, #tpu.memory_space<vmem>>, %arg11: memref<2x32xf32, #tpu.memory_space<vmem>>, %arg12: memref<2x32xf32, #tpu.memory_space<vmem>>, %arg13: memref<1x8xf32, #tpu.memory_space<vmem>>, %arg14: memref<1x64xf32, #tpu.memory_space<vmem>>, %arg15: memref<1x1xf32, #tpu.memory_space<vmem>>, %arg16: memref<1x1xf32, #tpu.memory_space<vmem>>) attributes {dimension_semantics = [#tpu.dimension_semantics<arbitrary>], iteration_bounds = array<i64: 2>, scalar_prefetch = 0 : i64, scratch_operands = 3 : i64, tpu.core_type = #tpu.core_type<tc>, window_params = [{pipeline_mode = #tpu.pipeline_mode<synchronous>, transform_indices = @transform_0, window_bounds = array<i64: 1, 32>}, {pipeline_mode = #tpu.pipeline_mode<synchronous>, transform_indices = @transform_1, window_bounds = array<i64: 2, 32>}, {pipeline_mode = #tpu.pipeline_mode<synchronous>, transform_indices = @transform_2, window_bounds = array<i64: 2, 32>}, {pipeline_mode = #tpu.pipeline_mode<synchronous>, transform_indices = @transform_3, window_bounds = array<i64: 2, 64, 128>}, {pipeline_mode = #tpu.pipeline_mode<synchronous>, transform_indices = @transform_4, window_bounds = array<i64: 2, 128>}, {pipeline_mode = #tpu.pipeline_mode<synchronous>, transform_indices = @transform_5, window_bounds = array<i64: 8, 32>}, {transform_indices = @transform_6, window_bounds = array<i64: 64, 256>}, {transform_indices = @transform_7, window_bounds = array<i64: 1, 256>}, {transform_indices = @transform_8, window_bounds = array<i64: 1, 256>}, {pipeline_mode = #tpu.pipeline_mode<synchronous>, transform_indices = @transform_9, window_bounds = array<i64: 1, 1>}, {pipeline_mode = #tpu.pipeline_mode<synchronous>, transform_indices = @transform_10, window_bounds = array<i64: 2, 32>}, {pipeline_mode = #tpu.pipeline_mode<synchronous>, transform_indices = @transform_11, window_bounds = array<i64: 2, 32>}, {pipeline_mode = #tpu.pipeline_mode<synchronous>, transform_indices = @transform_12, window_bounds = array<i64: 1, 8>}]} {
    %c0_i32 = arith.constant 0 : i32
    %0 = arith.cmpi eq, %arg0, %c0_i32 : i32
    %1 = arith.extui %0 : i1 to i32
    %c0_i32_0 = arith.constant 0 : i32
    %2 = arith.cmpi ne, %1, %c0_i32_0 : i32
    scf.if %2 {
      %c0_19 = arith.constant 0 : index
      %c0_20 = arith.constant 0 : index
      %28 = vector.load %arg2[%c0_19, %c0_20] : memref<2x32xf32, #tpu.memory_space<vmem>>, vector<2x32xf32>
      %c0_21 = arith.constant 0 : index
      %c0_22 = arith.constant 0 : index
      %29 = vector.load %arg3[%c0_21, %c0_22] : memref<2x32xf32, #tpu.memory_space<vmem>>, vector<2x32xf32>
      %c0_23 = arith.constant 0 : index
      %c0_24 = arith.constant 0 : index
      %30 = vector.load %arg1[%c0_23, %c0_24] : memref<1x32xf32, #tpu.memory_space<vmem>>, vector<1x32xf32>
      %31 = vector.extract_strided_slice %28 {offsets = [0, 0], sizes = [1, 32], strides = [1, 1]} : vector<2x32xf32> to vector<1x32xf32>
      %32 = vector.extract_strided_slice %29 {offsets = [0, 0], sizes = [1, 32], strides = [1, 1]} : vector<2x32xf32> to vector<1x32xf32>
      %33 = tpu.concatenate %30, %31 in 1 : vector<1x32xf32>, vector<1x32xf32> -> vector<1x64xf32>
      %c0_25 = arith.constant 0 : index
      %c0_26 = arith.constant 0 : index
      %c0_27 = arith.constant 0 : index
      %34 = vector.load %arg4[%c0_25, %c0_26, %c0_27] : memref<2x64x128xf32, #tpu.memory_space<vmem>>, vector<1x64x128xf32>
      %35 = vector.shape_cast %34 : vector<1x64x128xf32> to vector<64x128xf32>
      %cst_28 = arith.constant dense<0.000000e+00> : vector<1x128xf32>
      %36 = tpu.matmul %33, %35, %cst_28 {dimension_numbers = #tpu.dot_dimension_numbers<[1], [0], [0], [1], [0, 0, 1, 1], [], []>} : vector<1x64xf32>, vector<64x128xf32>, vector<1x128xf32> -> vector<1x128xf32>
      %c0_29 = arith.constant 0 : index
      %c0_30 = arith.constant 0 : index
      %37 = vector.load %arg5[%c0_29, %c0_30] : memref<2x128xf32, #tpu.memory_space<vmem>>, vector<1x128xf32>
      %38 = arith.addf %36, %37 : vector<1x128xf32>
      %39 = vector.extract_strided_slice %38 {offsets = [0, 0], sizes = [1, 32], strides = [1, 1]} : vector<1x128xf32> to vector<1x32xf32>
      %40 = arith.negf %39 : vector<1x32xf32>
      %41 = math.exp %40 : vector<1x32xf32>
      %cst_31 = arith.constant 1.000000e+00 : f32
      %42 = vector.broadcast %cst_31 : f32 to vector<1x32xf32>
      %43 = arith.addf %42, %41 : vector<1x32xf32>
      %44 = arith.divf %42, %43 : vector<1x32xf32>
      %45 = vector.extract_strided_slice %38 {offsets = [0, 32], sizes = [1, 32], strides = [1, 1]} : vector<1x128xf32> to vector<1x32xf32>
      %46 = arith.negf %45 : vector<1x32xf32>
      %47 = math.exp %46 : vector<1x32xf32>
      %cst_32 = arith.constant 1.000000e+00 : f32
      %48 = vector.broadcast %cst_32 : f32 to vector<1x32xf32>
      %49 = arith.addf %48, %47 : vector<1x32xf32>
      %50 = arith.divf %48, %49 : vector<1x32xf32>
      %51 = vector.extract_strided_slice %38 {offsets = [0, 64], sizes = [1, 32], strides = [1, 1]} : vector<1x128xf32> to vector<1x32xf32>
      %52 = math.tanh %51 : vector<1x32xf32>
      %53 = vector.extract_strided_slice %38 {offsets = [0, 96], sizes = [1, 32], strides = [1, 1]} : vector<1x128xf32> to vector<1x32xf32>
      %54 = arith.negf %53 : vector<1x32xf32>
      %55 = math.exp %54 : vector<1x32xf32>
      %cst_33 = arith.constant 1.000000e+00 : f32
      %56 = vector.broadcast %cst_33 : f32 to vector<1x32xf32>
      %57 = arith.addf %56, %55 : vector<1x32xf32>
      %58 = arith.divf %56, %57 : vector<1x32xf32>
      %59 = arith.mulf %50, %32 : vector<1x32xf32>
      %60 = arith.mulf %44, %52 : vector<1x32xf32>
      %61 = arith.addf %59, %60 : vector<1x32xf32>
      %62 = math.tanh %61 : vector<1x32xf32>
      %63 = arith.mulf %58, %62 : vector<1x32xf32>
      %c0_34 = arith.constant 0 : index
      %c0_35 = arith.constant 0 : index
      %64 = vector.load %arg11[%c0_34, %c0_35] : memref<2x32xf32, #tpu.memory_space<vmem>>, vector<1x32xf32>
      tpu.vector_store %arg11[%c0_34, %c0_35], %63 {strides = array<i32>} : memref<2x32xf32, #tpu.memory_space<vmem>>, vector<1x32xf32>,
      %c0_36 = arith.constant 0 : index
      %c0_37 = arith.constant 0 : index
      %65 = vector.load %arg12[%c0_36, %c0_37] : memref<2x32xf32, #tpu.memory_space<vmem>>, vector<1x32xf32>
      tpu.vector_store %arg12[%c0_36, %c0_37], %61 {strides = array<i32>} : memref<2x32xf32, #tpu.memory_space<vmem>>, vector<1x32xf32>,
      %66 = vector.extract_strided_slice %28 {offsets = [1, 0], sizes = [1, 32], strides = [1, 1]} : vector<2x32xf32> to vector<1x32xf32>
      %67 = vector.extract_strided_slice %29 {offsets = [1, 0], sizes = [1, 32], strides = [1, 1]} : vector<2x32xf32> to vector<1x32xf32>
      %68 = tpu.concatenate %63, %66 in 1 : vector<1x32xf32>, vector<1x32xf32> -> vector<1x64xf32>
      %c1 = arith.constant 1 : index
      %c0_38 = arith.constant 0 : index
      %c0_39 = arith.constant 0 : index
      %69 = vector.load %arg4[%c1, %c0_38, %c0_39] : memref<2x64x128xf32, #tpu.memory_space<vmem>>, vector<1x64x128xf32>
      %70 = vector.shape_cast %69 : vector<1x64x128xf32> to vector<64x128xf32>
      %cst_40 = arith.constant dense<0.000000e+00> : vector<1x128xf32>
      %71 = tpu.matmul %68, %70, %cst_40 {dimension_numbers = #tpu.dot_dimension_numbers<[1], [0], [0], [1], [0, 0, 1, 1], [], []>} : vector<1x64xf32>, vector<64x128xf32>, vector<1x128xf32> -> vector<1x128xf32>
      %c1_41 = arith.constant 1 : index
      %c0_42 = arith.constant 0 : index
      %72 = vector.load %arg5[%c1_41, %c0_42] : memref<2x128xf32, #tpu.memory_space<vmem>>, vector<1x128xf32>
      %73 = arith.addf %71, %72 : vector<1x128xf32>
      %74 = vector.extract_strided_slice %73 {offsets = [0, 0], sizes = [1, 32], strides = [1, 1]} : vector<1x128xf32> to vector<1x32xf32>
      %75 = arith.negf %74 : vector<1x32xf32>
      %76 = math.exp %75 : vector<1x32xf32>
      %cst_43 = arith.constant 1.000000e+00 : f32
      %77 = vector.broadcast %cst_43 : f32 to vector<1x32xf32>
      %78 = arith.addf %77, %76 : vector<1x32xf32>
      %79 = arith.divf %77, %78 : vector<1x32xf32>
      %80 = vector.extract_strided_slice %73 {offsets = [0, 32], sizes = [1, 32], strides = [1, 1]} : vector<1x128xf32> to vector<1x32xf32>
      %81 = arith.negf %80 : vector<1x32xf32>
      %82 = math.exp %81 : vector<1x32xf32>
      %cst_44 = arith.constant 1.000000e+00 : f32
      %83 = vector.broadcast %cst_44 : f32 to vector<1x32xf32>
      %84 = arith.addf %83, %82 : vector<1x32xf32>
      %85 = arith.divf %83, %84 : vector<1x32xf32>
      %86 = vector.extract_strided_slice %73 {offsets = [0, 64], sizes = [1, 32], strides = [1, 1]} : vector<1x128xf32> to vector<1x32xf32>
      %87 = math.tanh %86 : vector<1x32xf32>
      %88 = vector.extract_strided_slice %73 {offsets = [0, 96], sizes = [1, 32], strides = [1, 1]} : vector<1x128xf32> to vector<1x32xf32>
      %89 = arith.negf %88 : vector<1x32xf32>
      %90 = math.exp %89 : vector<1x32xf32>
      %cst_45 = arith.constant 1.000000e+00 : f32
      %91 = vector.broadcast %cst_45 : f32 to vector<1x32xf32>
      %92 = arith.addf %91, %90 : vector<1x32xf32>
      %93 = arith.divf %91, %92 : vector<1x32xf32>
      %94 = arith.mulf %85, %67 : vector<1x32xf32>
      %95 = arith.mulf %79, %87 : vector<1x32xf32>
      %96 = arith.addf %94, %95 : vector<1x32xf32>
      %97 = math.tanh %96 : vector<1x32xf32>
      %98 = arith.mulf %93, %97 : vector<1x32xf32>
      %c1_46 = arith.constant 1 : index
      %c0_47 = arith.constant 0 : index
      %99 = vector.load %arg11[%c1_46, %c0_47] : memref<2x32xf32, #tpu.memory_space<vmem>>, vector<1x32xf32>
      tpu.vector_store %arg11[%c1_46, %c0_47], %98 {strides = array<i32>} : memref<2x32xf32, #tpu.memory_space<vmem>>, vector<1x32xf32>,
      %c1_48 = arith.constant 1 : index
      %c0_49 = arith.constant 0 : index
      %100 = vector.load %arg12[%c1_48, %c0_49] : memref<2x32xf32, #tpu.memory_space<vmem>>, vector<1x32xf32>
      tpu.vector_store %arg12[%c1_48, %c0_49], %96 {strides = array<i32>} : memref<2x32xf32, #tpu.memory_space<vmem>>, vector<1x32xf32>,
      %c0_50 = arith.constant 0 : index
      %c0_51 = arith.constant 0 : index
      %101 = vector.load %arg6[%c0_50, %c0_51] : memref<8x32xf32, #tpu.memory_space<vmem>>, vector<8x32xf32>
      %cst_52 = arith.constant dense<0.000000e+00> : vector<1x8xf32>
      %102 = tpu.matmul %98, %101, %cst_52 {dimension_numbers = #tpu.dot_dimension_numbers<[1], [1], [0], [0], [0, 0, 1, 0], [], []>} : vector<1x32xf32>, vector<8x32xf32>, vector<1x8xf32> -> vector<1x8xf32>
      %c0_53 = arith.constant 0 : index
      %c0_54 = arith.constant 0 : index
      %103 = vector.load %arg13[%c0_53, %c0_54] : memref<1x8xf32, #tpu.memory_space<vmem>>, vector<1x8xf32>
      tpu.vector_store %arg13[%c0_53, %c0_54], %102 {strides = array<i32>} : memref<1x8xf32, #tpu.memory_space<vmem>>, vector<1x8xf32>,
      %cst_55 = arith.constant dense<0xFF800000> : vector<1xf32>
      %104 = vector.multi_reduction <maximumf>, %102, %cst_55 [1] : vector<1x8xf32> to vector<1xf32>
      %105 = vector.shape_cast %104 : vector<1xf32> to vector<1x1xf32>
      %106 = vector.broadcast %105 : vector<1x1xf32> to vector<1x8xf32>
      %107 = arith.subf %102, %106 : vector<1x8xf32>
      %108 = math.exp %107 : vector<1x8xf32>
      %cst_56 = arith.constant dense<0.000000e+00> : vector<1xf32>
      %109 = vector.multi_reduction <add>, %108, %cst_56 [1] : vector<1x8xf32> to vector<1xf32>
      %110 = vector.shape_cast %109 : vector<1xf32> to vector<1x1xf32>
      %111 = vector.broadcast %110 : vector<1x1xf32> to vector<1x8xf32>
      %112 = arith.divf %108, %111 : vector<1x8xf32>
      %cst_57 = arith.constant dense<0.000000e+00> : vector<1x32xf32>
      %113 = tpu.matmul %112, %101, %cst_57 {dimension_numbers = #tpu.dot_dimension_numbers<[1], [0], [0], [1], [0, 0, 1, 1], [], []>} : vector<1x8xf32>, vector<8x32xf32>, vector<1x32xf32> -> vector<1x32xf32>
      %114 = tpu.concatenate %98, %113 in 1 : vector<1x32xf32>, vector<1x32xf32> -> vector<1x64xf32>
      %c0_58 = arith.constant 0 : index
      %c0_59 = arith.constant 0 : index
      %115 = vector.load %arg14[%c0_58, %c0_59] : memref<1x64xf32, #tpu.memory_space<vmem>>, vector<1x64xf32>
      tpu.vector_store %arg14[%c0_58, %c0_59], %114 {strides = array<i32>} : memref<1x64xf32, #tpu.memory_space<vmem>>, vector<1x64xf32>,
      %cst_60 = arith.constant 0xFF800000 : f32
      %116 = vector.broadcast %cst_60 : f32 to vector<1x1xf32>
      %c0_61 = arith.constant 0 : index
      %c0_62 = arith.constant 0 : index
      %117 = vector.load %arg15[%c0_61, %c0_62] : memref<1x1xf32, #tpu.memory_space<vmem>>, vector<1x1xf32>
      tpu.vector_store %arg15[%c0_61, %c0_62], %116 {strides = array<i32>} : memref<1x1xf32, #tpu.memory_space<vmem>>, vector<1x1xf32>,
      %cst_63 = arith.constant 0.000000e+00 : f32
      %118 = vector.broadcast %cst_63 : f32 to vector<1x1xf32>
      %c0_64 = arith.constant 0 : index
      %c0_65 = arith.constant 0 : index
      %119 = vector.load %arg16[%c0_64, %c0_65] : memref<1x1xf32, #tpu.memory_space<vmem>>, vector<1x1xf32>
      tpu.vector_store %arg16[%c0_64, %c0_65], %118 {strides = array<i32>} : memref<1x1xf32, #tpu.memory_space<vmem>>, vector<1x1xf32>,
    } else {
    }
    %c0 = arith.constant 0 : index
    %c0_1 = arith.constant 0 : index
    %3 = vector.load %arg14[%c0, %c0_1] : memref<1x64xf32, #tpu.memory_space<vmem>>, vector<1x64xf32>
    %c0_2 = arith.constant 0 : index
    %c0_3 = arith.constant 0 : index
    %4 = vector.load %arg7[%c0_2, %c0_3] : memref<64x256xf32, #tpu.memory_space<vmem>>, vector<64x256xf32>
    %cst = arith.constant dense<0.000000e+00> : vector<1x256xf32>
    %5 = tpu.matmul %3, %4, %cst {dimension_numbers = #tpu.dot_dimension_numbers<[1], [0], [0], [1], [0, 0, 1, 1], [], []>} : vector<1x64xf32>, vector<64x256xf32>, vector<1x256xf32> -> vector<1x256xf32>
    %c0_4 = arith.constant 0 : index
    %c0_5 = arith.constant 0 : index
    %6 = vector.load %arg8[%c0_4, %c0_5] : memref<1x256xf32, #tpu.memory_space<vmem>>, vector<1x256xf32>
    %7 = arith.addf %5, %6 : vector<1x256xf32>
    %c0_6 = arith.constant 0 : index
    %c0_7 = arith.constant 0 : index
    %8 = vector.load %arg9[%c0_6, %c0_7] : memref<1x256xf32, #tpu.memory_space<vmem>>, vector<1x256xf32>
    tpu.vector_store %arg9[%c0_6, %c0_7], %7 {strides = array<i32>} : memref<1x256xf32, #tpu.memory_space<vmem>>, vector<1x256xf32>,
    %c0_8 = arith.constant 0 : index
    %c0_9 = arith.constant 0 : index
    %9 = vector.load %arg15[%c0_8, %c0_9] : memref<1x1xf32, #tpu.memory_space<vmem>>, vector<1x1xf32>
    %cst_10 = arith.constant dense<0xFF800000> : vector<1xf32>
    %10 = vector.multi_reduction <maximumf>, %7, %cst_10 [1] : vector<1x256xf32> to vector<1xf32>
    %11 = vector.shape_cast %10 : vector<1xf32> to vector<1x1xf32>
    %12 = arith.maximumf %9, %11 : vector<1x1xf32>
    %c0_11 = arith.constant 0 : index
    %c0_12 = arith.constant 0 : index
    %13 = vector.load %arg16[%c0_11, %c0_12] : memref<1x1xf32, #tpu.memory_space<vmem>>, vector<1x1xf32>
    %14 = arith.subf %9, %12 : vector<1x1xf32>
    %15 = math.exp %14 : vector<1x1xf32>
    %16 = arith.mulf %13, %15 : vector<1x1xf32>
    %17 = vector.broadcast %12 : vector<1x1xf32> to vector<1x256xf32>
    %18 = arith.subf %7, %17 : vector<1x256xf32>
    %19 = math.exp %18 : vector<1x256xf32>
    %cst_13 = arith.constant dense<0.000000e+00> : vector<1xf32>
    %20 = vector.multi_reduction <add>, %19, %cst_13 [1] : vector<1x256xf32> to vector<1xf32>
    %21 = vector.shape_cast %20 : vector<1xf32> to vector<1x1xf32>
    %22 = arith.addf %16, %21 : vector<1x1xf32>
    %c0_14 = arith.constant 0 : index
    %c0_15 = arith.constant 0 : index
    %23 = vector.load %arg16[%c0_14, %c0_15] : memref<1x1xf32, #tpu.memory_space<vmem>>, vector<1x1xf32>
    tpu.vector_store %arg16[%c0_14, %c0_15], %22 {strides = array<i32>} : memref<1x1xf32, #tpu.memory_space<vmem>>, vector<1x1xf32>,
    %c0_16 = arith.constant 0 : index
    %c0_17 = arith.constant 0 : index
    %24 = vector.load %arg15[%c0_16, %c0_17] : memref<1x1xf32, #tpu.memory_space<vmem>>, vector<1x1xf32>
    tpu.vector_store %arg15[%c0_16, %c0_17], %12 {strides = array<i32>} : memref<1x1xf32, #tpu.memory_space<vmem>>, vector<1x1xf32>,
    %c1_i32 = arith.constant 1 : i32
    %25 = arith.cmpi eq, %arg0, %c1_i32 : i32
    %26 = arith.extui %25 : i1 to i32
    %c0_i32_18 = arith.constant 0 : i32
    %27 = arith.cmpi ne, %26, %c0_i32_18 : i32
    scf.if %27 {
      %c0_19 = arith.constant 0 : index
      %c0_20 = arith.constant 0 : index
      %28 = vector.load %arg15[%c0_19, %c0_20] : memref<1x1xf32, #tpu.memory_space<vmem>>, vector<1x1xf32>
      %c0_21 = arith.constant 0 : index
      %c0_22 = arith.constant 0 : index
      %29 = vector.load %arg16[%c0_21, %c0_22] : memref<1x1xf32, #tpu.memory_space<vmem>>, vector<1x1xf32>
      %30 = math.log %29 : vector<1x1xf32>
      %31 = arith.addf %28, %30 : vector<1x1xf32>
      %c0_23 = arith.constant 0 : index
      %c0_24 = arith.constant 0 : index
      %32 = vector.load %arg10[%c0_23, %c0_24] : memref<1x1xf32, #tpu.memory_space<vmem>>, vector<1x1xf32>
      tpu.vector_store %arg10[%c0_23, %c0_24], %31 {strides = array<i32>} : memref<1x1xf32, #tpu.memory_space<vmem>>, vector<1x1xf32>,
    } else {
    }
    return
  }
  func.func @transform_0(%arg0: i32) -> (i32, i32) {
    %c0_i32 = arith.constant 0 : i32
    %c0_i32_0 = arith.constant 0 : i32
    %c0_i32_1 = arith.constant 0 : i32
    return %c0_i32, %c0_i32_0 : i32, i32
  }
  func.func @transform_1(%arg0: i32) -> (i32, i32) {
    %c0_i32 = arith.constant 0 : i32
    %c0_i32_0 = arith.constant 0 : i32
    %c0_i32_1 = arith.constant 0 : i32
    return %c0_i32, %c0_i32_0 : i32, i32
  }
  func.func @transform_2(%arg0: i32) -> (i32, i32) {
    %c0_i32 = arith.constant 0 : i32
    %c0_i32_0 = arith.constant 0 : i32
    %c0_i32_1 = arith.constant 0 : i32
    return %c0_i32, %c0_i32_0 : i32, i32
  }
  func.func @transform_3(%arg0: i32) -> (i32, i32, i32) {
    %c0_i32 = arith.constant 0 : i32
    %c0_i32_0 = arith.constant 0 : i32
    %c0_i32_1 = arith.constant 0 : i32
    %c0_i32_2 = arith.constant 0 : i32
    return %c0_i32, %c0_i32_0, %c0_i32_1 : i32, i32, i32
  }
  func.func @transform_4(%arg0: i32) -> (i32, i32) {
    %c0_i32 = arith.constant 0 : i32
    %c0_i32_0 = arith.constant 0 : i32
    %c0_i32_1 = arith.constant 0 : i32
    return %c0_i32, %c0_i32_0 : i32, i32
  }
  func.func @transform_5(%arg0: i32) -> (i32, i32) {
    %c0_i32 = arith.constant 0 : i32
    %c0_i32_0 = arith.constant 0 : i32
    %c0_i32_1 = arith.constant 0 : i32
    return %c0_i32, %c0_i32_0 : i32, i32
  }
  func.func @transform_6(%arg0: i32) -> (i32, i32) {
    %c0_i32 = arith.constant 0 : i32
    %c0_i32_0 = arith.constant 0 : i32
    return %c0_i32, %arg0 : i32, i32
  }
  func.func @transform_7(%arg0: i32) -> (i32, i32) {
    %c0_i32 = arith.constant 0 : i32
    %c0_i32_0 = arith.constant 0 : i32
    return %c0_i32, %arg0 : i32, i32
  }
  func.func @transform_8(%arg0: i32) -> (i32, i32) {
    %c0_i32 = arith.constant 0 : i32
    %c0_i32_0 = arith.constant 0 : i32
    return %c0_i32, %arg0 : i32, i32
  }
  func.func @transform_9(%arg0: i32) -> (i32, i32) {
    %c0_i32 = arith.constant 0 : i32
    %c0_i32_0 = arith.constant 0 : i32
    %c0_i32_1 = arith.constant 0 : i32
    return %c0_i32, %c0_i32_0 : i32, i32
  }
  func.func @transform_10(%arg0: i32) -> (i32, i32) {
    %c0_i32 = arith.constant 0 : i32
    %c0_i32_0 = arith.constant 0 : i32
    %c0_i32_1 = arith.constant 0 : i32
    return %c0_i32, %c0_i32_0 : i32, i32
  }
  func.func @transform_11(%arg0: i32) -> (i32, i32) {
    %c0_i32 = arith.constant 0 : i32
    %c0_i32_0 = arith.constant 0 : i32
    %c0_i32_1 = arith.constant 0 : i32
    return %c0_i32, %c0_i32_0 : i32, i32
  }
  func.func @transform_12(%arg0: i32) -> (i32, i32) {
    %c0_i32 = arith.constant 0 : i32
    %c0_i32_0 = arith.constant 0 : i32
    %c0_i32_1 = arith.constant 0 : i32
    return %c0_i32, %c0_i32_0 : i32, i32
  }
}

</mosaic_0001>

<llo_original>
// kernel: step.1
$region0: #{step.1}
  #allocation0 [shape = 'u32[]', space=smem, size = 0x4, offset = 0x4, fixed_abs, tag = 'smem constant byte address 0x4 - core index']
  #allocation1 [shape = 'u32[144,128]{1,0:T(1,128)}', space=vmem, size = 0x12000, scoped, tag = 'internal scratch']
  #allocation2 [shape = 'f32[1,64]{1,0:T(1,128)}', space=vmem, size = 0x200, scoped, tag = 'scratch operand']
  #allocation3 [shape = 'f32[1,1]{1,0:T(1,128)}', space=vmem, size = 0x200, scoped, tag = 'scratch operand']
  #allocation4 [shape = 'f32[1,1]{1,0:T(1,128)}', space=vmem, size = 0x200, scoped, tag = 'scratch operand']
  %s0 = inlined_call_operand.vmem [shape: f32[1,32], index: 0, kind: input, shape index: {}]
  %s1 = inlined_call_operand.vmem [shape: f32[2,32], index: 1, kind: input, shape index: {}, may-alias: {1,10}]
  %s2 = inlined_call_operand.vmem [shape: f32[2,32], index: 2, kind: input, shape index: {}, may-alias: {2,11}]
  %s3 = inlined_call_operand.hbm [shape: f32[2,64,128], index: 3, kind: input, shape index: {}]
  %s4 = inlined_call_operand.vmem [shape: f32[2,128], index: 4, kind: input, shape index: {}]
  %s5 = inlined_call_operand.vmem [shape: f32[8,32], index: 5, kind: input, shape index: {}]
  %s6 = inlined_call_operand.hbm [shape: f32[64,512], index: 6, kind: input, shape index: {}]
  %s7 = inlined_call_operand.vmem [shape: f32[1,512], index: 7, kind: input, shape index: {}]
  %s8 = inlined_call_operand.vmem [shape: f32[1,512], index: 8, kind: output, shape index: {0}]
  %s9 = inlined_call_operand.hbm [shape: f32[1,1], index: 9, kind: output, shape index: {1}]
  %s10 = inlined_call_operand.vmem [shape: f32[2,32], index: 10, kind: output, shape index: {2}, may-alias: {1,10}]
  %s11 = inlined_call_operand.vmem [shape: f32[2,32], index: 11, kind: output, shape index: {3}, may-alias: {2,11}]
  %s12 = inlined_call_operand.hbm [shape: f32[1,8], index: 12, kind: output, shape index: {4}]
  %13 = xla_tuple %s8, %s9, %s10, %s11, %s12
  %s14 = sld [smem:[#allocation0]]
  $region113: #{step.1} parent=0
    _
  %s16 = ssub.s32 1, %s14
  %s17 = scalar_select 0, %s16, %s14
  $region1: #{step.1} parent=0
    #allocation5 [shape = 'u8[65536]{0}', space=vmem, size = 0x10000, scoped, tag = 'input window, operand 3, single buffered']
    #allocation6 [shape = 's32[2]{0}', space=sflag, size = 0x8, scoped, tag = 'scoped memory for step.1']
    #allocation7 [shape = 's32[2]{0}', space=sflag, size = 0x8, scoped, tag = 'scoped memory for step.1']
    #allocation8 [shape = 'u8[131072]{0}', space=vmem, size = 0x20000, scoped, tag = 'input window, operand 6']
    #allocation9 [shape = 's32[2]{0}', space=sflag, size = 0x8, scoped, tag = 'scoped memory for step.1']
    #allocation10 [shape = 'u8[512]{0}', space=vmem, size = 0x400, scoped, tag = 'output window, operand 1, single buffered']
    #allocation11 [shape = 'u8[512]{0}', space=vmem, size = 0x400, scoped, tag = 'output window, operand 4, single buffered']
    #allocation12 [shape = 's32[1]{0}', space=sflag, size = 0x4, scoped, tag = 'scoped memory for step.1']
    %18 = vsyncpa [#allocation6], 0
    %19 = vsyncpa [#allocation9], 0
    %s20 = scalar_lea.sflag [#allocation9], 1
    %21 = vsyncpa %s20, 0
    %22 = vsyncpa [#allocation7], 0
    %23 = vsyncpa [#allocation12], 0
    loop: start=0, step=1, limit=4
    $region2: #{step.1} parent=1 // loop_pre_header
      _
    $region3: #{step.1} parent=1 // loop_header
      %s25 = sphi 0, %s29
      %p26 = scmp.ge.s32.totalorder %s25, 4
      %s33 = sphi 0, %s33
      %s35 = sphi 0, %s33
      %s36 = sphi 0, %s35
      %s50 = sphi 0, %s36
      %s54 = sphi 0, %s54
      %s56 = sphi 0, %s54
      %s57 = sphi 0, %s56
      %s71 = sphi 0, %s57
      %s75 = sphi 0, %s75
      %s77 = sphi 0, %s75
      %s78 = sphi 0, %s77
      %s92 = sphi 0, %s78
      %s96 = sphi 0, %s96
      %s98 = sphi 0, %s96
      %s99 = sphi 0, %s98
      %s113 = sphi 0, %s99
      %s117 = sphi 0, %s117
      %s119 = sphi 0, %s117
      %s120 = sphi 0, %s119
      %s134 = sphi 0, %s120
      %s138 = sphi 0, %s138
      %s140 = sphi 0, %s138
      %s141 = sphi 0, %s140
      %s155 = sphi 0, %s141
      %s161 = sphi 0, %s163
      %s164 = sphi 0, %s161
      %s165 = sphi 0, %s164
      %s181 = sphi 0, %s165
      %s187 = sphi 0, %s189
      %s190 = sphi 0, %s187
      %s191 = sphi 0, %s190
      %s207 = sphi 0, %s191
      %s213 = sphi 0, %s215
      %s216 = sphi 0, %s213
      %s217 = sphi 0, %s216
      %s233 = sphi 0, %s217
      %s237 = sphi 0, %s237
      %s239 = sphi 0, %s237
      %s240 = sphi 0, %s239
      %s254 = sphi 0, %s240
      %s258 = sphi 0, %s258
      %s260 = sphi 0, %s258
      %s261 = sphi 0, %s260
      %s275 = sphi 0, %s261
      %s279 = sphi 0, %s279
      %s281 = sphi 0, %s279
      %s282 = sphi 0, %s281
      %s296 = sphi 0, %s282
      %s300 = sphi 0, %s300
      %s302 = sphi 0, %s300
      %s303 = sphi 0, %s302
      %s317 = sphi 0, %s303
    $region4: #{step.1} parent=1 // loop_header_branch
      %28 = sbr.rel (%p26) target = $region8
    $region5: #{step.1} parent=1 // loop_body
      %s30 = ssub.s32 %s25, 1
      %s31 = ssub.s32 %s25, 2
      %s32 = sadd.s32 %s25, 1
      %s34 = sadd.s32 %s33, 1
      %p37 = scmp.eq.s32.totalorder %s25, 1
      %p38 = scmp.ne.s32.totalorder %s33, %s35
      %p39 = scmp.eq.s32.totalorder %s25, 0
      %p40 = por %p38, %p39
      %p41 = scmp.ne.s32.totalorder %s33, %s35
      %p42 = scmp.eq.s32.totalorder %s30, 1
      %p43 = por %p41, %p42
      %p44 = scmp.ne.s32.totalorder %s35, %s36
      %p45 = scmp.eq.s32.totalorder %s30, 0
      %p46 = por %p44, %p45
      %p47 = scmp.ne.s32.totalorder %s35, %s36
      %p48 = scmp.eq.s32.totalorder %s31, 1
      %p49 = por %p47, %p48
      %p51 = scmp.ne.s32.totalorder %s36, %s50
      %p52 = scmp.eq.s32.totalorder %s31, 0
      %p53 = por %p51, %p52
      %s55 = sadd.s32 %s54, 1
      %p58 = scmp.eq.s32.totalorder %s25, 1
      %p59 = scmp.ne.s32.totalorder %s54, %s56
      %p60 = scmp.eq.s32.totalorder %s25, 0
      %p61 = por %p59, %p60
      %p62 = scmp.ne.s32.totalorder %s54, %s56
      %p63 = scmp.eq.s32.totalorder %s30, 1
      %p64 = por %p62, %p63
      %p65 = scmp.ne.s32.totalorder %s56, %s57
      %p66 = scmp.eq.s32.totalorder %s30, 0
      %p67 = por %p65, %p66
      %p68 = scmp.ne.s32.totalorder %s56, %s57
      %p69 = scmp.eq.s32.totalorder %s31, 1
      %p70 = por %p68, %p69
      %p72 = scmp.ne.s32.totalorder %s57, %s71
      %p73 = scmp.eq.s32.totalorder %s31, 0
      %p74 = por %p72, %p73
      %s76 = sadd.s32 %s75, 1
      %p79 = scmp.eq.s32.totalorder %s25, 1
      %p80 = scmp.ne.s32.totalorder %s75, %s77
      %p81 = scmp.eq.s32.totalorder %s25, 0
      %p82 = por %p80, %p81
      %p83 = scmp.ne.s32.totalorder %s75, %s77
      %p84 = scmp.eq.s32.totalorder %s30, 1
      %p85 = por %p83, %p84
      %p86 = scmp.ne.s32.totalorder %s77, %s78
      %p87 = scmp.eq.s32.totalorder %s30, 0
      %p88 = por %p86, %p87
      %p89 = scmp.ne.s32.totalorder %s77, %s78
      %p90 = scmp.eq.s32.totalorder %s31, 1
      %p91 = por %p89, %p90
      %p93 = scmp.ne.s32.totalorder %s78, %s92
      %p94 = scmp.eq.s32.totalorder %s31, 0
      %p95 = por %p93, %p94
      %s97 = sadd.s32 %s96, 1
      %p100 = scmp.eq.s32.totalorder %s25, 1
      %p101 = scmp.ne.s32.totalorder %s96, %s98
      %p102 = scmp.eq.s32.totalorder %s25, 0
      %p103 = por %p101, %p102
      %p104 = scmp.ne.s32.totalorder %s96, %s98
      %p105 = scmp.eq.s32.totalorder %s30, 1
      %p106 = por %p104, %p105
      %p107 = scmp.ne.s32.totalorder %s98, %s99
      %p108 = scmp.eq.s32.totalorder %s30, 0
      %p109 = por %p107, %p108
      %p110 = scmp.ne.s32.totalorder %s98, %s99
      %p111 = scmp.eq.s32.totalorder %s31, 1
      %p112 = por %p110, %p111
      %p114 = scmp.ne.s32.totalorder %s99, %s113
      %p115 = scmp.eq.s32.totalorder %s31, 0
      %p116 = por %p114, %p115
      %s118 = sadd.s32 %s117, 1
      %p121 = scmp.eq.s32.totalorder %s25, 1
      %p122 = scmp.ne.s32.totalorder %s117, %s119
      %p123 = scmp.eq.s32.totalorder %s25, 0
      %p124 = por %p122, %p123
      %p125 = scmp.ne.s32.totalorder %s117, %s119
      %p126 = scmp.eq.s32.totalorder %s30, 1
      %p127 = por %p125, %p126
      %p128 = scmp.ne.s32.totalorder %s119, %s120
      %p129 = scmp.eq.s32.totalorder %s30, 0
      %p130 = por %p128, %p129
      %p131 = scmp.ne.s32.totalorder %s119, %s120
      %p132 = scmp.eq.s32.totalorder %s31, 1
      %p133 = por %p131, %p132
      %p135 = scmp.ne.s32.totalorder %s120, %s134
      %p136 = scmp.eq.s32.totalorder %s31, 0
      %p137 = por %p135, %p136
      %s139 = sadd.s32 %s138, 1
      %p142 = scmp.eq.s32.totalorder %s25, 1
      %p143 = scmp.ne.s32.totalorder %s138, %s140
      %p144 = scmp.eq.s32.totalorder %s25, 0
      %p145 = por %p143, %p144
      %p146 = scmp.ne.s32.totalorder %s138, %s140
      %p147 = scmp.eq.s32.totalorder %s30, 1
      %p148 = por %p146, %p147
      %p149 = scmp.ne.s32.totalorder %s140, %s141
      %p150 = scmp.eq.s32.totalorder %s30, 0
      %p151 = por %p149, %p150
      %p152 = scmp.ne.s32.totalorder %s140, %s141
      %p153 = scmp.eq.s32.totalorder %s31, 1
      %p154 = por %p152, %p153
      %p156 = scmp.ne.s32.totalorder %s141, %s155
      %p157 = scmp.eq.s32.totalorder %s31, 0
      %p158 = por %p156, %p157
      %s159 = ssub.s32 %s25, %s32
      %p160 = scmp.eq.s32.totalorder %s159, 0
      %s162 = sadd.s32 %s161, 1
      %s163 = scalar_select %p160, %s161, %s162
      %p166 = pneg %p160
      %p167 = scmp.eq.s32.totalorder %s25, 1
      %p168 = por %p166, %p167
      %p169 = scmp.ne.s32.totalorder %s161, %s164
      %p170 = scmp.eq.s32.totalorder %s25, 0
      %p171 = por %p169, %p170
      %p172 = scmp.ne.s32.totalorder %s161, %s164
      %p173 = scmp.eq.s32.totalorder %s30, 1
      %p174 = por %p172, %p173
      %p175 = scmp.ne.s32.totalorder %s164, %s165
      %p176 = scmp.eq.s32.totalorder %s30, 0
      %p177 = por %p175, %p176
      %p178 = scmp.ne.s32.totalorder %s164, %s165
      %p179 = scmp.eq.s32.totalorder %s31, 1
      %p180 = por %p178, %p179
      %p182 = scmp.ne.s32.totalorder %s165, %s181
      %p183 = scmp.eq.s32.totalorder %s31, 0
      %p184 = por %p182, %p183
      %s185 = ssub.s32 %s25, %s32
      %p186 = scmp.eq.s32.totalorder %s185, 0
      %s188 = sadd.s32 %s187, 1
      %s189 = scalar_select %p186, %s187, %s188
      %p192 = pneg %p186
      %p193 = scmp.eq.s32.totalorder %s25, 1
      %p194 = por %p192, %p193
      %p195 = scmp.ne.s32.totalorder %s187, %s190
      %p196 = scmp.eq.s32.totalorder %s25, 0
      %p197 = por %p195, %p196
      %p198 = scmp.ne.s32.totalorder %s187, %s190
      %p199 = scmp.eq.s32.totalorder %s30, 1
      %p200 = por %p198, %p199
      %p201 = scmp.ne.s32.totalorder %s190, %s191
      %p202 = scmp.eq.s32.totalorder %s30, 0
      %p203 = por %p201, %p202
      %p204 = scmp.ne.s32.totalorder %s190, %s191
      %p205 = scmp.eq.s32.totalorder %s31, 1
      %p206 = por %p204, %p205
      %p208 = scmp.ne.s32.totalorder %s191, %s207
      %p209 = scmp.eq.s32.totalorder %s31, 0
      %p210 = por %p208, %p209
      %s211 = ssub.s32 %s25, %s32
      %p212 = scmp.eq.s32.totalorder %s211, 0
      %s214 = sadd.s32 %s213, 1
      %s215 = scalar_select %p212, %s213, %s214
      %p218 = pneg %p212
      %p219 = scmp.eq.s32.totalorder %s25, 1
      %p220 = por %p218, %p219
      %p221 = scmp.ne.s32.totalorder %s213, %s216
      %p222 = scmp.eq.s32.totalorder %s25, 0
      %p223 = por %p221, %p222
      %p224 = scmp.ne.s32.totalorder %s213, %s216
      %p225 = scmp.eq.s32.totalorder %s30, 1
      %p226 = por %p224, %p225
      %p227 = scmp.ne.s32.totalorder %s216, %s217
      %p228 = scmp.eq.s32.totalorder %s30, 0
      %p229 = por %p227, %p228
      %p230 = scmp.ne.s32.totalorder %s216, %s217
      %p231 = scmp.eq.s32.totalorder %s31, 1
      %p232 = por %p230, %p231
      %p234 = scmp.ne.s32.totalorder %s217, %s233
      %p235 = scmp.eq.s32.totalorder %s31, 0
      %p236 = por %p234, %p235
      %s238 = sadd.s32 %s237, 1
      %p241 = scmp.eq.s32.totalorder %s25, 1
      %p242 = scmp.ne.s32.totalorder %s237, %s239
      %p243 = scmp.eq.s32.totalorder %s25, 0
      %p244 = por %p242, %p243
      %p245 = scmp.ne.s32.totalorder %s237, %s239
      %p246 = scmp.eq.s32.totalorder %s30, 1
      %p247 = por %p245, %p246
      %p248 = scmp.ne.s32.totalorder %s239, %s240
      %p249 = scmp.eq.s32.totalorder %s30, 0
      %p250 = por %p248, %p249
      %p251 = scmp.ne.s32.totalorder %s239, %s240
      %p252 = scmp.eq.s32.totalorder %s31, 1
      %p253 = por %p251, %p252
      %p255 = scmp.ne.s32.totalorder %s240, %s254
      %p256 = scmp.eq.s32.totalorder %s31, 0
      %p257 = por %p255, %p256
      %s259 = sadd.s32 %s258, 1
      %p262 = scmp.eq.s32.totalorder %s25, 1
      %p263 = scmp.ne.s32.totalorder %s258, %s260
      %p264 = scmp.eq.s32.totalorder %s25, 0
      %p265 = por %p263, %p264
      %p266 = scmp.ne.s32.totalorder %s258, %s260
      %p267 = scmp.eq.s32.totalorder %s30, 1
      %p268 = por %p266, %p267
      %p269 = scmp.ne.s32.totalorder %s260, %s261
      %p270 = scmp.eq.s32.totalorder %s30, 0
      %p271 = por %p269, %p270
      %p272 = scmp.ne.s32.totalorder %s260, %s261
      %p273 = scmp.eq.s32.totalorder %s31, 1
      %p274 = por %p272, %p273
      %p276 = scmp.ne.s32.totalorder %s261, %s275
      %p277 = scmp.eq.s32.totalorder %s31, 0
      %p278 = por %p276, %p277
      %s280 = sadd.s32 %s279, 1
      %p283 = scmp.eq.s32.totalorder %s25, 1
      %p284 = scmp.ne.s32.totalorder %s279, %s281
      %p285 = scmp.eq.s32.totalorder %s25, 0
      %p286 = por %p284, %p285
      %p287 = scmp.ne.s32.totalorder %s279, %s281
      %p288 = scmp.eq.s32.totalorder %s30, 1
      %p289 = por %p287, %p288
      %p290 = scmp.ne.s32.totalorder %s281, %s282
      %p291 = scmp.eq.s32.totalorder %s30, 0
      %p292 = por %p290, %p291
      %p293 = scmp.ne.s32.totalorder %s281, %s282
      %p294 = scmp.eq.s32.totalorder %s31, 1
      %p295 = por %p293, %p294
      %p297 = scmp.ne.s32.totalorder %s282, %s296
      %p298 = scmp.eq.s32.totalorder %s31, 0
      %p299 = por %p297, %p298
      %s301 = sadd.s32 %s300, 1
      %p304 = scmp.eq.s32.totalorder %s25, 1
      %p305 = scmp.ne.s32.totalorder %s300, %s302
      %p306 = scmp.eq.s32.totalorder %s25, 0
      %p307 = por %p305, %p306
      %p308 = scmp.ne.s32.totalorder %s300, %s302
      %p309 = scmp.eq.s32.totalorder %s30, 1
      %p310 = por %p308, %p309
      %p311 = scmp.ne.s32.totalorder %s302, %s303
      %p312 = scmp.eq.s32.totalorder %s30, 0
      %p313 = por %p311, %p312
      %p314 = scmp.ne.s32.totalorder %s302, %s303
      %p315 = scmp.eq.s32.totalorder %s31, 1
      %p316 = por %p314, %p315
      %p318 = scmp.ne.s32.totalorder %s303, %s317
      %p319 = scmp.eq.s32.totalorder %s31, 0
      %p320 = por %p318, %p319
      %p321 = scmp.le.s32.totalorder 1, %s25
      %p322 = scmp.lt.s32.totalorder %s25, 3
      %p323 = pnand %p321, %p322
      %p324 = pneg %p323
      // Predicated region
      $region9: #{step.1} parent=5 // pred_check
        _
      $region10: #{step.1} parent=5 // pred_check_branch
        %326 = sbr.rel (%p323) target = $region12
      $region11: #{step.1} parent=5 // pred_region
        %s327 = ssub.s32 %s25, 1
        // Predicated region
        $region13: #{step.1} parent=11 // pred_check
          %p328 = pneg %p46
        $region14: #{step.1} parent=11 // pred_check_branch
          %330 = sbr.rel (%p328) target = $region16
        $region15: #{step.1} parent=11 // pred_region
          _
        $region16: #{step.1} parent=11 // pred_fallthru
          _
        // Predicated region
        $region17: #{step.1} parent=11 // pred_check
          %p331 = pneg %p67
        $region18: #{step.1} parent=11 // pred_check_branch
          %333 = sbr.rel (%p331) target = $region20
        $region19: #{step.1} parent=11 // pred_region
          _
        $region20: #{step.1} parent=11 // pred_fallthru
          _
        // Predicated region
        $region21: #{step.1} parent=11 // pred_check
          %p334 = pneg %p88
        $region22: #{step.1} parent=11 // pred_check_branch
          %336 = sbr.rel (%p334) target = $region24
        $region23: #{step.1} parent=11 // pred_region
          _
        $region24: #{step.1} parent=11 // pred_fallthru
          _
        // Predicated region
        $region25: #{step.1} parent=11 // pred_check
          %p337 = pneg %p109
        $region26: #{step.1} parent=11 // pred_check_branch
          %339 = sbr.rel (%p337) target = $region28
        $region27: #{step.1} parent=11 // pred_region
          %s341 = ssub.s32 2048, 2048
          %342 = vsyncadd [#allocation6], %s341
          %s343 = sshll.u32 [#allocation5], 4
          %s344 = int_to_ptr.vmem [resolvable:$true] %s343
          %349 = dma.hbm_to_vmem [thread:$0]  %s3, 2048, %s344, [#allocation6], 128, 128, 8
        $region28: #{step.1} parent=11 // pred_fallthru
          _
        // Predicated region
        $region29: #{step.1} parent=11 // pred_check
          %p350 = pneg %p130
        $region30: #{step.1} parent=11 // pred_check_branch
          %352 = sbr.rel (%p350) target = $region32
        $region31: #{step.1} parent=11 // pred_region
          _
        $region32: #{step.1} parent=11 // pred_fallthru
          _
        // Predicated region
        $region33: #{step.1} parent=11 // pred_check
          %p353 = pneg %p151
        $region34: #{step.1} parent=11 // pred_check_branch
          %355 = sbr.rel (%p353) target = $region36
        $region35: #{step.1} parent=11 // pred_region
          _
        $region36: #{step.1} parent=11 // pred_fallthru
          _
      $region12: #{step.1} parent=5 // pred_fallthru
        _
      %p356 = scmp.lt.s32.totalorder %s25, 2
      // Predicated region
      $region37: #{step.1} parent=5 // pred_check
        %p357 = pneg %p356
      $region38: #{step.1} parent=5 // pred_check_branch
        %359 = sbr.rel (%p357) target = $region40
      $region39: #{step.1} parent=5 // pred_region
        // Predicated region
        $region41: #{step.1} parent=39 // pred_check
          %p360 = pneg %p171
        $region42: #{step.1} parent=39 // pred_check_branch
          %362 = sbr.rel (%p360) target = $region44
        $region43: #{step.1} parent=39 // pred_region
          %s363 = sand.u32 %s161, 1
          %s364 = scalar_lea.sflag [#allocation9], %s363
          %s365 = sand.u32 %s161, 1
          %s366 = smul.addr %s365, 128
          %s367 = scalar_lea.vmem [#allocation8], %s366
          %s368 = smul.u32 2, %s25
          %s370 = ssub.s32 2048, 2048
          %371 = vsyncadd %s364, %s370
          %s372 = smul.addr %s368, 128
          %s373 = scalar_lea.hbm %s6, %s372
          %s374 = sshll.u32 %s367, 4
          %s375 = int_to_ptr.vmem [resolvable:$true] %s374
          %380 = dma.hbm_to_vmem [thread:$0]  %s373, 2048, %s375, %s364, 512, 256, 16
        $region44: #{step.1} parent=39 // pred_fallthru
          _
        // Predicated region
        $region45: #{step.1} parent=39 // pred_check
          %p381 = pneg %p197
        $region46: #{step.1} parent=39 // pred_check_branch
          %383 = sbr.rel (%p381) target = $region48
        $region47: #{step.1} parent=39 // pred_region
          %s384 = smul.u32 2, %s25
          %p385 = scmp.lt.s32.totalorder %s384, 3
          %s386 = scalar_select %p385, %s384, 3
          %s387 = scalar_lea.vmem %s7, %s386
          %s388 = smul.u32 2, %s25
        $region48: #{step.1} parent=39 // pred_fallthru
          _
      $region40: #{step.1} parent=5 // pred_fallthru
        _
      %p389 = scmp.le.s32.totalorder 1, %s25
      %p390 = scmp.lt.s32.totalorder %s25, 3
      %p391 = pnand %p389, %p390
      %p392 = pneg %p391
      // Predicated region
      $region49: #{step.1} parent=5 // pred_check
        _
      $region50: #{step.1} parent=5 // pred_check_branch
        %394 = sbr.rel (%p391) target = $region52
      $region51: #{step.1} parent=5 // pred_region
        %s395 = ssub.s32 %s25, 1
        // Predicated region
        $region53: #{step.1} parent=51 // pred_check
          %p396 = pneg %p109
        $region54: #{step.1} parent=51 // pred_check_branch
          %398 = sbr.rel (%p396) target = $region56
        $region55: #{step.1} parent=51 // pred_region
          %399 = dma.done [#allocation6], 2048
        $region56: #{step.1} parent=51 // pred_fallthru
          _
        %s400 = sand.u32 %s164, 1
        %s401 = scalar_lea.sflag [#allocation9], %s400
        %s402 = sand.u32 %s164, 1
        %s403 = smul.addr %s402, 128
        %s404 = scalar_lea.vmem [#allocation8], %s403
        // Predicated region
        $region57: #{step.1} parent=51 // pred_check
          %p405 = pneg %p177
        $region58: #{step.1} parent=51 // pred_check_branch
          %407 = sbr.rel (%p405) target = $region60
        $region59: #{step.1} parent=51 // pred_region
          %408 = dma.done %s401, 2048
        $region60: #{step.1} parent=51 // pred_fallthru
          _
        %p409 = pneg %p46
        %p410 = pneg %p43
        %p411 = pneg %p67
        %p412 = pneg %p64
        %p413 = pneg %p88
        %p414 = pneg %p85
        %p415 = pneg %p109
        %p416 = pneg %p106
        %p417 = pneg %p130
        %p418 = pneg %p127
        %p419 = pneg %p151
        %p420 = pneg %p148
        %s421 = sand.u32 %s164, 1
        %s422 = scalar_lea.sflag [#allocation9], %s421
        %s423 = sand.u32 %s164, 1
        %s424 = smul.addr %s423, 128
        %s425 = scalar_lea.vmem [#allocation8], %s424
        %p426 = pneg %p177
        %p427 = pneg %p174
        %s428 = smul.u32 2, %s30
        %p429 = scmp.lt.s32.totalorder %s428, 3
        %s430 = scalar_select %p429, %s428, 3
        %s431 = scalar_lea.vmem %s7, %s430
        %p432 = pneg %p203
        %p433 = pneg %p200
        %p434 = pneg %p229
        %p435 = pneg %p226
        %s436 = smul.u32 2, %s30
        %p437 = scmp.lt.s32.totalorder %s436, 3
        %s438 = scalar_select %p437, %s436, 3
        %s439 = scalar_lea.vmem %s8, %s438
        %p440 = pneg %p250
        %p441 = pneg %p247
        %p442 = pneg %p271
        %p443 = pneg %p268
        %p444 = pneg %p292
        %p445 = pneg %p289
        %p446 = pneg %p313
        %p447 = pneg %p310
        %s448 = smul.u32 2, %s30
        %s449 = smul.u32 2, %s30
        %p450 = scmp.lt.s32.totalorder %s449, 3
        %s451 = scalar_select %p450, %s449, 3
        %s452 = scalar_lea.vmem %s7, %s451
        %s453 = smul.u32 2, %s30
        %s454 = smul.u32 2, %s30
        %p455 = scmp.lt.s32.totalorder %s454, 3
        %s456 = scalar_select %p455, %s454, 3
        %s457 = scalar_lea.vmem %s8, %s456
        %s458 = smul.u32 2, %s30
        %p459 = scmp.eq.s32.totalorder %s30, 0
        // Predicated region
        $region61: #{step.1} parent=51 // pred_check
          %p460 = pneg %p459
        $region62: #{step.1} parent=51 // pred_check_branch
          %462 = sbr.rel (%p460) target = $region64
        $region63: #{step.1} parent=51 // pred_region
          %v463 = vld [vmem:[%s1] sm:$0x3]
          %v464 = vld [vmem:[%s2] sm:$0x3]
          %v465 = vld [vmem:[%s0] sm:$0x1]
          %467 = vrot.lane.b32.xlu0 %v463, 32
          %v468 = vpop.permute.xlu0 %467
          %vm470 = vcmask 261120
          %v471 = vsel %vm470, %v465, %v468
          %v472 = vld [vmem:[#allocation5] sm:$0xff]
          %v473 = vld [vmem:[#allocation5 + $0x8] sm:$0xff]
          %v474 = vld [vmem:[#allocation5 + $0x10] sm:$0xff]
          %v475 = vld [vmem:[#allocation5 + $0x18] sm:$0xff]
          %v476 = vld [vmem:[#allocation5 + $0x20] sm:$0xff]
          %v477 = vld [vmem:[#allocation5 + $0x28] sm:$0xff]
          %v478 = vld [vmem:[#allocation5 + $0x30] sm:$0xff]
          %v479 = vld [vmem:[#allocation5 + $0x38] sm:$0xff]
          %v480 = vld [vmem:[%s4] sm:$0x1]
          %vm481 = vcmask 523264
          %v483 = vsel %vm481, %v471, 0
          %485 = vmatprep.subr.mxu0 0.0
          %486 = vmatpush1.msra.mxu0 0.0
          %487 = vmatprep.subr.mxu0 0.0
          %488 = vmatpush1.msra.mxu0 0.0
          %489 = vmatprep.subr.mxu0 0.0
          %490 = vmatpush1.msra.mxu0 0.0
          %491 = vmatprep.subr.mxu0 0.0
          %492 = vmatpush1.msra.mxu0 0.0
          %493 = vmatprep.subr.mxu0 0.0
          %494 = vmatpush1.msra.mxu0 0.0
          %495 = vmatprep.subr.mxu0 0.0
          %496 = vmatpush1.msra.mxu0 0.0
          %497 = vmatprep.subr.mxu0 0.0
          %498 = vmatpush1.msra.mxu0 0.0
          %499 = vmatprep.subr.mxu0 0.0
          %500 = vmatpush1.msra.mxu0 0.0
          %501 = vmatprep.subr.mxu0 0.0
          %502 = vmatpush1.msra.mxu0 %v479
          %503 = vmatprep.subr.mxu0 0.0
          %504 = vmatpush1.msra.mxu0 %v478
          %505 = vmatprep.subr.mxu0 0.0
          %506 = vmatpush1.msra.mxu0 %v477
          %507 = vmatprep.subr.mxu0 0.0
          %508 = vmatpush1.msra.mxu0 %v476
          %509 = vmatprep.subr.mxu0 0.0
          %510 = vmatpush1.msra.mxu0 %v475
          %511 = vmatprep.subr.mxu0 0.0
          %512 = vmatpush1.msra.mxu0 %v474
          %513 = vmatprep.subr.mxu0 0.0
          %514 = vmatpush1.msra.mxu0 %v473
          %515 = vmatprep.subr.mxu0 0.0
          %516 = vmatpush1.msra.mxu0 %v472
          %517 = vmatprep.subr.mxu0 0.0
          %518 = vmatpush2.msra.mxu0 0.0
          %519 = vmatprep.subr.mxu0 0.0
          %520 = vmatpush2.msra.mxu0 0.0
          %521 = vmatprep.subr.mxu0 0.0
          %522 = vmatpush2.msra.mxu0 0.0
          %523 = vmatprep.subr.mxu0 0.0
          %524 = vmatpush2.msra.mxu0 0.0
          %525 = vmatprep.subr.mxu0 0.0
          %526 = vmatpush2.msra.mxu0 0.0
          %527 = vmatprep.subr.mxu0 0.0
          %528 = vmatpush2.msra.mxu0 0.0
          %529 = vmatprep.subr.mxu0 0.0
          %530 = vmatpush2.msra.mxu0 0.0
          %531 = vmatprep.subr.mxu0 0.0
          %532 = vmatpush2.msra.mxu0 0.0
          %533 = vmatprep.subr.mxu0 0.0
          %534 = vmatpush2.msra.mxu0 0.0
          %535 = vmatprep.subr.mxu0 0.0
          %536 = vmatpush2.msra.mxu0 0.0
          %537 = vmatprep.subr.mxu0 0.0
          %538 = vmatpush2.msra.mxu0 0.0
          %539 = vmatprep.subr.mxu0 0.0
          %540 = vmatpush2.msra.mxu0 0.0
          %541 = vmatprep.subr.mxu0 0.0
          %542 = vmatpush2.msra.mxu0 0.0
          %543 = vmatprep.subr.mxu0 0.0
          %544 = vmatpush2.msra.mxu0 0.0
          %545 = vmatprep.subr.mxu0 0.0
          %546 = vmatpush2.msra.mxu0 0.0
          %547 = vmatprep.subr.mxu0 0.0
          %548 = vmatpush2.msra.mxu0 0.0
          %549 = vmatprep.mubr.f32.mxu0 0.0
          %550 = vmatmul.mubr.f32.gmra.mxu0 %v483
          %v551 = vpop.f32.mrf.mxu0
          %v552 = vadd.f32 %v480, %v551
          %v553 = vpop.f32.mrf.mxu0
          %554 = vdwg.mxu0
          %v555 = vxor.u32 %v552, 2147483648
          %v556 = vmul.f32 %v555, 1.442695
          %v557 = vpow.pop %v556
          %v558 = vadd.f32 %v557, 1.0
          %v559 = vrcp.pop %v558
          %v560 = vmul.f32 1.0, %v559
          %v561 = vtanh.pop %v552
          %563 = vrot.lane.b32.xlu0 %v464, 32
          %v564 = vpop.permute.xlu0 %563
          %v566 = vmul.f32 %v560, %v564
          %568 = vrot.lane.b32.xlu0 %v561, 64
          %v569 = vpop.permute.xlu0 %568
          %v571 = vmul.f32 %v560, %v569
          %573 = vrot.lane.b32.xlu0 %v571, 32
          %v574 = vpop.permute.xlu0 %573
          %v576 = vadd.f32 %v566, %v574
          %v577 = vtanh.pop %v576
          %579 = vrot.lane.b32.xlu0 %v577, 64
          %v580 = vpop.permute.xlu0 %579
          %v582 = vmul.f32 %v560, %v580
          %584 = vrot.lane.b32.xlu0 %v582, 32
          %v585 = vpop.permute.xlu0 %584
          %vm587 = vcmask 253952
          %588 = vst.msk [vmem:[%s10] sm:$0x1] %vm587, %v585
          %590 = vrot.lane.b32.xlu0 %v576, 96
          %v591 = vpop.permute.xlu0 %590
          %593 = vst.msk [vmem:[%s11] sm:$0x1] %vm587, %v591
          %v594 = vrot.slane %v463, 1
          %595 = vrot.lane.b32.xlu0 %v594, 32
          %v596 = vpop.permute.xlu0 %595
          %v598 = vsel %vm470, %v585, %v596
          %s599 = scalar_lea.vmem [#allocation5], 64
          %v600 = vld [vmem:[%s599] sm:$0xff]
          %v601 = vld [vmem:[%s599 + $0x8] sm:$0xff]
          %v602 = vld [vmem:[%s599 + $0x10] sm:$0xff]
          %v603 = vld [vmem:[%s599 + $0x18] sm:$0xff]
          %v604 = vld [vmem:[%s599 + $0x20] sm:$0xff]
          %v605 = vld [vmem:[%s599 + $0x28] sm:$0xff]
          %v606 = vld [vmem:[%s599 + $0x30] sm:$0xff]
          %v607 = vld [vmem:[%s599 + $0x38] sm:$0xff]
          %v608 = vld [vmem:[%s4 + $0x1] sm:$0x1]
          %v610 = vsel %vm481, %v598, 0
          %612 = vmatprep.subr.mxu0 0.0
          %613 = vmatpush1.msra.mxu0 0.0
          %614 = vmatprep.subr.mxu0 0.0
          %615 = vmatpush1.msra.mxu0 0.0
          %616 = vmatprep.subr.mxu0 0.0
          %617 = vmatpush1.msra.mxu0 0.0
          %618 = vmatprep.subr.mxu0 0.0
          %619 = vmatpush1.msra.mxu0 0.0
          %620 = vmatprep.subr.mxu0 0.0
          %621 = vmatpush1.msra.mxu0 0.0
          %622 = vmatprep.subr.mxu0 0.0
          %623 = vmatpush1.msra.mxu0 0.0
          %624 = vmatprep.subr.mxu0 0.0
          %625 = vmatpush1.msra.mxu0 0.0
          %626 = vmatprep.subr.mxu0 0.0
          %627 = vmatpush1.msra.mxu0 0.0
          %628 = vmatprep.subr.mxu0 0.0
          %629 = vmatpush1.msra.mxu0 %v607
          %630 = vmatprep.subr.mxu0 0.0
          %631 = vmatpush1.msra.mxu0 %v606
          %632 = vmatprep.subr.mxu0 0.0
          %633 = vmatpush1.msra.mxu0 %v605
          %634 = vmatprep.subr.mxu0 0.0
          %635 = vmatpush1.msra.mxu0 %v604
          %636 = vmatprep.subr.mxu0 0.0
          %637 = vmatpush1.msra.mxu0 %v603
          %638 = vmatprep.subr.mxu0 0.0
          %639 = vmatpush1.msra.mxu0 %v602
          %640 = vmatprep.subr.mxu0 0.0
          %641 = vmatpush1.msra.mxu0 %v601
          %642 = vmatprep.subr.mxu0 0.0
          %643 = vmatpush1.msra.mxu0 %v600
          %644 = vmatprep.subr.mxu0 0.0
          %645 = vmatpush2.msra.mxu0 0.0
          %646 = vmatprep.subr.mxu0 0.0
          %647 = vmatpush2.msra.mxu0 0.0
          %648 = vmatprep.subr.mxu0 0.0
          %649 = vmatpush2.msra.mxu0 0.0
          %650 = vmatprep.subr.mxu0 0.0
          %651 = vmatpush2.msra.mxu0 0.0
          %652 = vmatprep.subr.mxu0 0.0
          %653 = vmatpush2.msra.mxu0 0.0
          %654 = vmatprep.subr.mxu0 0.0
          %655 = vmatpush2.msra.mxu0 0.0
          %656 = vmatprep.subr.mxu0 0.0
          %657 = vmatpush2.msra.mxu0 0.0
          %658 = vmatprep.subr.mxu0 0.0
          %659 = vmatpush2.msra.mxu0 0.0
          %660 = vmatprep.subr.mxu0 0.0
          %661 = vmatpush2.msra.mxu0 0.0
          %662 = vmatprep.subr.mxu0 0.0
          %663 = vmatpush2.msra.mxu0 0.0
          %664 = vmatprep.subr.mxu0 0.0
          %665 = vmatpush2.msra.mxu0 0.0
          %666 = vmatprep.subr.mxu0 0.0
          %667 = vmatpush2.msra.mxu0 0.0
          %668 = vmatprep.subr.mxu0 0.0
          %669 = vmatpush2.msra.mxu0 0.0
          %670 = vmatprep.subr.mxu0 0.0
          %671 = vmatpush2.msra.mxu0 0.0
          %672 = vmatprep.subr.mxu0 0.0
          %673 = vmatpush2.msra.mxu0 0.0
          %674 = vmatprep.subr.mxu0 0.0
          %675 = vmatpush2.msra.mxu0 0.0
          %676 = vmatprep.mubr.f32.mxu0 0.0
          %677 = vmatmul.mubr.f32.gmra.mxu0 %v610
          %v678 = vpop.f32.mrf.mxu0
          %v679 = vadd.f32 %v608, %v678
          %v680 = vpop.f32.mrf.mxu0
          %681 = vdwg.mxu0
          %v682 = vxor.u32 %v679, 2147483648
          %v683 = vmul.f32 %v682, 1.442695
          %v684 = vpow.pop %v683
          %v685 = vadd.f32 %v684, 1.0
          %v686 = vrcp.pop %v685
          %v687 = vmul.f32 1.0, %v686
          %v688 = vtanh.pop %v679
          %v689 = vrot.slane %v464, 1
          %690 = vrot.lane.b32.xlu0 %v689, 32
          %v691 = vpop.permute.xlu0 %690
          %v693 = vmul.f32 %v687, %v691
          %695 = vrot.lane.b32.xlu0 %v688, 64
          %v696 = vpop.permute.xlu0 %695
          %v698 = vmul.f32 %v687, %v696
          %700 = vrot.lane.b32.xlu0 %v698, 32
          %v701 = vpop.permute.xlu0 %700
          %v703 = vadd.f32 %v693, %v701
          %v704 = vtanh.pop %v703
          %706 = vrot.lane.b32.xlu0 %v704, 64
          %v707 = vpop.permute.xlu0 %706
          %v709 = vmul.f32 %v687, %v707
          %711 = vrot.lane.b32.xlu0 %v709, 32
          %v712 = vpop.permute.xlu0 %711
          %714 = vst.msk [vmem:[%s10 + $0x1] sm:$0x1] %vm587, %v712
          %716 = vrot.lane.b32.xlu0 %v703, 96
          %v717 = vpop.permute.xlu0 %716
          %719 = vst.msk [vmem:[%s11 + $0x1] sm:$0x1] %vm587, %v717
          %v720 = vld [vmem:[%s5] sm:$0xff]
          %v721 = vsel %vm470, %v712, 0
          %v724 = vsel %vm470, %v720, 0
          %726 = vmatprep.subr.mxu0 0.0
          %727 = vmatpush1.xpose.msra.mxu0 0.0
          %728 = vmatprep.subr.mxu0 0.0
          %729 = vmatpush1.xpose.msra.mxu0 0.0
          %730 = vmatprep.subr.mxu0 0.0
          %731 = vmatpush1.xpose.msra.mxu0 0.0
          %732 = vmatprep.subr.mxu0 0.0
          %733 = vmatpush1.xpose.msra.mxu0 0.0
          %734 = vmatprep.subr.mxu0 0.0
          %735 = vmatpush1.xpose.msra.mxu0 0.0
          %736 = vmatprep.subr.mxu0 0.0
          %737 = vmatpush1.xpose.msra.mxu0 0.0
          %738 = vmatprep.subr.mxu0 0.0
          %739 = vmatpush1.xpose.msra.mxu0 0.0
          %740 = vmatprep.subr.mxu0 0.0
          %741 = vmatpush1.xpose.msra.mxu0 0.0
          %742 = vmatprep.subr.mxu0 0.0
          %743 = vmatpush1.xpose.msra.mxu0 0.0
          %744 = vmatprep.subr.mxu0 0.0
          %745 = vmatpush1.xpose.msra.mxu0 0.0
          %746 = vmatprep.subr.mxu0 0.0
          %747 = vmatpush1.xpose.msra.mxu0 0.0
          %748 = vmatprep.subr.mxu0 0.0
          %749 = vmatpush1.xpose.msra.mxu0 0.0
          %750 = vmatprep.subr.mxu0 0.0
          %751 = vmatpush1.xpose.msra.mxu0 0.0
          %752 = vmatprep.subr.mxu0 0.0
          %753 = vmatpush1.xpose.msra.mxu0 0.0
          %754 = vmatprep.subr.mxu0 0.0
          %755 = vmatpush1.xpose.msra.mxu0 0.0
          %756 = vmatprep.subr.mxu0 0.0
          %757 = vmatpush1.xpose.msra.mxu0 %v724
          %758 = vmatprep.subr.mxu0 0.0
          %759 = vmatpush2.xpose.msra.mxu0 0.0
          %760 = vmatprep.subr.mxu0 0.0
          %761 = vmatpush2.xpose.msra.mxu0 0.0
          %762 = vmatprep.subr.mxu0 0.0
          %763 = vmatpush2.xpose.msra.mxu0 0.0
          %764 = vmatprep.subr.mxu0 0.0
          %765 = vmatpush2.xpose.msra.mxu0 0.0
          %766 = vmatprep.subr.mxu0 0.0
          %767 = vmatpush2.xpose.msra.mxu0 0.0
          %768 = vmatprep.subr.mxu0 0.0
          %769 = vmatpush2.xpose.msra.mxu0 0.0
          %770 = vmatprep.subr.mxu0 0.0
          %771 = vmatpush2.xpose.msra.mxu0 0.0
          %772 = vmatprep.subr.mxu0 0.0
          %773 = vmatpush2.xpose.msra.mxu0 0.0
          %774 = vmatprep.subr.mxu0 0.0
          %775 = vmatpush2.xpose.msra.mxu0 0.0
          %776 = vmatprep.subr.mxu0 0.0
          %777 = vmatpush2.xpose.msra.mxu0 0.0
          %778 = vmatprep.subr.mxu0 0.0
          %779 = vmatpush2.xpose.msra.mxu0 0.0
          %780 = vmatprep.subr.mxu0 0.0
          %781 = vmatpush2.xpose.msra.mxu0 0.0
          %782 = vmatprep.subr.mxu0 0.0
          %783 = vmatpush2.xpose.msra.mxu0 0.0
          %784 = vmatprep.subr.mxu0 0.0
          %785 = vmatpush2.xpose.msra.mxu0 0.0
          %786 = vmatprep.subr.mxu0 0.0
          %787 = vmatpush2.xpose.msra.mxu0 0.0
          %788 = vmatprep.subr.mxu0 0.0
          %789 = vmatpush2.xpose.msra.mxu0 0.0
          %790 = vmatprep.mubr.f32.mxu0 0.0
          %791 = vmatmul.mubr.f32.gmra.mxu0 %v721
          %v792 = vpop.f32.mrf.mxu0
          %v793 = vadd.f32 0.0, %v792
          %v794 = vpop.f32.mrf.mxu0
          %795 = vdwg.mxu0
          %vm796 = vcmask 57344
          %797 = vst.msk [vmem:[#allocation11] sm:$0x1] %vm796, %v793
          %v798 = vsel %vm796, %v793, -inf
          %799 = vmax.xlane.f32.xlu0 %v798
          %v800 = vpop.xlane.xlu0 %799
          %v801 = vsub.f32 %v793, %v800
          %v802 = vmul.f32 %v801, 1.442695
          %v803 = vpow.pop %v802
          %v804 = vsel %vm796, %v803, 0.0
          %805 = vadd.xlane.f32.xlu0 %v804
          %v806 = vpop.xlane.xlu0 %805
          %v807 = vrcp.pop %v806
          %v808 = vmul.f32 %v803, %v807
          %vm809 = vcmask 64512
          %v811 = vsel %vm809, %v808, 0
          %813 = vmatprep.subr.mxu0 0.0
          %814 = vmatpush1.msra.mxu0 0.0
          %815 = vmatprep.subr.mxu0 0.0
          %816 = vmatpush1.msra.mxu0 0.0
          %817 = vmatprep.subr.mxu0 0.0
          %818 = vmatpush1.msra.mxu0 0.0
          %819 = vmatprep.subr.mxu0 0.0
          %820 = vmatpush1.msra.mxu0 0.0
          %821 = vmatprep.subr.mxu0 0.0
          %822 = vmatpush1.msra.mxu0 0.0
          %823 = vmatprep.subr.mxu0 0.0
          %824 = vmatpush1.msra.mxu0 0.0
          %825 = vmatprep.subr.mxu0 0.0
          %826 = vmatpush1.msra.mxu0 0.0
          %827 = vmatprep.subr.mxu0 0.0
          %828 = vmatpush1.msra.mxu0 0.0
          %829 = vmatprep.subr.mxu0 0.0
          %830 = vmatpush1.msra.mxu0 0.0
          %831 = vmatprep.subr.mxu0 0.0
          %832 = vmatpush1.msra.mxu0 0.0
          %833 = vmatprep.subr.mxu0 0.0
          %834 = vmatpush1.msra.mxu0 0.0
          %835 = vmatprep.subr.mxu0 0.0
          %836 = vmatpush1.msra.mxu0 0.0
          %837 = vmatprep.subr.mxu0 0.0
          %838 = vmatpush1.msra.mxu0 0.0
          %839 = vmatprep.subr.mxu0 0.0
          %840 = vmatpush1.msra.mxu0 0.0
          %841 = vmatprep.subr.mxu0 0.0
          %842 = vmatpush1.msra.mxu0 0.0
          %843 = vmatprep.subr.mxu0 0.0
          %844 = vmatpush1.msra.mxu0 %v720
          %845 = vmatprep.subr.mxu0 0.0
          %846 = vmatpush2.msra.mxu0 0.0
          %847 = vmatprep.subr.mxu0 0.0
          %848 = vmatpush2.msra.mxu0 0.0
          %849 = vmatprep.subr.mxu0 0.0
          %850 = vmatpush2.msra.mxu0 0.0
          %851 = vmatprep.subr.mxu0 0.0
          %852 = vmatpush2.msra.mxu0 0.0
          %853 = vmatprep.subr.mxu0 0.0
          %854 = vmatpush2.msra.mxu0 0.0
          %855 = vmatprep.subr.mxu0 0.0
          %856 = vmatpush2.msra.mxu0 0.0
          %857 = vmatprep.subr.mxu0 0.0
          %858 = vmatpush2.msra.mxu0 0.0
          %859 = vmatprep.subr.mxu0 0.0
          %860 = vmatpush2.msra.mxu0 0.0
          %861 = vmatprep.subr.mxu0 0.0
          %862 = vmatpush2.msra.mxu0 0.0
          %863 = vmatprep.subr.mxu0 0.0
          %864 = vmatpush2.msra.mxu0 0.0
          %865 = vmatprep.subr.mxu0 0.0
          %866 = vmatpush2.msra.mxu0 0.0
          %867 = vmatprep.subr.mxu0 0.0
          %868 = vmatpush2.msra.mxu0 0.0
          %869 = vmatprep.subr.mxu0 0.0
          %870 = vmatpush2.msra.mxu0 0.0
          %871 = vmatprep.subr.mxu0 0.0
          %872 = vmatpush2.msra.mxu0 0.0
          %873 = vmatprep.subr.mxu0 0.0
          %874 = vmatpush2.msra.mxu0 0.0
          %875 = vmatprep.subr.mxu0 0.0
          %876 = vmatpush2.msra.mxu0 0.0
          %877 = vmatprep.mubr.f32.mxu0 0.0
          %878 = vmatmul.mubr.f32.gmra.mxu0 %v811
          %v879 = vpop.f32.mrf.mxu0
          %v880 = vadd.f32 0.0, %v879
          %v881 = vpop.f32.mrf.mxu0
          %882 = vdwg.mxu0
          %884 = vrot.lane.b32.xlu0 %v880, 32
          %v885 = vpop.permute.xlu0 %884
          %v887 = vsel %vm470, %v712, %v885
          %vm888 = vcmask 516096
          %889 = vst.msk [vmem:[#allocation2] sm:$0x1] %vm888, %v887
          %vm890 = vcmask 0
          %891 = vst.msk [vmem:[#allocation3] sm:$0x1] %vm890, -inf
          %892 = vst.msk [vmem:[#allocation4] sm:$0x1] %vm890, 0.0
        $region64: #{step.1} parent=51 // pred_fallthru
          _
        %v893 = vld [vmem:[#allocation2] sm:$0x1]
        %v894 = vld [vmem:[%s404] sm:$0xff]
        %v895 = vld [vmem:[%s404 + $0x8] sm:$0xff]
        %v896 = vld [vmem:[%s404 + $0x10] sm:$0xff]
        %v897 = vld [vmem:[%s404 + $0x18] sm:$0xff]
        %v898 = vld [vmem:[%s404 + $0x20] sm:$0xff]
        %v899 = vld [vmem:[%s404 + $0x28] sm:$0xff]
        %v900 = vld [vmem:[%s404 + $0x30] sm:$0xff]
        %v901 = vld [vmem:[%s404 + $0x38] sm:$0xff]
        %v902 = vld [vmem:[%s404 + $0x40] sm:$0xff]
        %v903 = vld [vmem:[%s404 + $0x48] sm:$0xff]
        %v904 = vld [vmem:[%s404 + $0x50] sm:$0xff]
        %v905 = vld [vmem:[%s404 + $0x58] sm:$0xff]
        %v906 = vld [vmem:[%s404 + $0x60] sm:$0xff]
        %v907 = vld [vmem:[%s404 + $0x68] sm:$0xff]
        %v908 = vld [vmem:[%s404 + $0x70] sm:$0xff]
        %v909 = vld [vmem:[%s404 + $0x78] sm:$0xff]
        %v910 = vld [vmem:[%s452] sm:$0x3]
        %v912 = vlaneseq
        %v913 = vshrl.u32 %v912, 7
        %v914 = vsub.s32 0, %v913
        %v915 = vrot.slane %v910, %v914
        %v916 = vlaneseq
        %v917 = vshrl.u32 %v916, 7
        %v918 = vsub.s32 1, %v917
        %v919 = vrot.slane %v910, %v918
        %vm922 = vcmask 523264
        %v924 = vsel %vm922, %v893, 0
        %926 = vmatprep.subr.mxu0 0.0
        %927 = vmatpush1.msra.mxu0 0.0
        %928 = vmatprep.subr.mxu0 0.0
        %929 = vmatpush1.msra.mxu0 0.0
        %930 = vmatprep.subr.mxu0 0.0
        %931 = vmatpush1.msra.mxu0 0.0
        %932 = vmatprep.subr.mxu0 0.0
        %933 = vmatpush1.msra.mxu0 0.0
        %934 = vmatprep.subr.mxu0 0.0
        %935 = vmatpush1.msra.mxu0 0.0
        %936 = vmatprep.subr.mxu0 0.0
        %937 = vmatpush1.msra.mxu0 0.0
        %938 = vmatprep.subr.mxu0 0.0
        %939 = vmatpush1.msra.mxu0 0.0
        %940 = vmatprep.subr.mxu0 0.0
        %941 = vmatpush1.msra.mxu0 0.0
        %942 = vmatprep.subr.mxu0 %v909
        %943 = vmatpush1.msra.mxu0 %v908
        %944 = vmatprep.subr.mxu0 %v907
        %945 = vmatpush1.msra.mxu0 %v906
        %946 = vmatprep.subr.mxu0 %v905
        %947 = vmatpush1.msra.mxu0 %v904
        %948 = vmatprep.subr.mxu0 %v903
        %949 = vmatpush1.msra.mxu0 %v902
        %950 = vmatprep.subr.mxu0 %v901
        %951 = vmatpush1.msra.mxu0 %v900
        %952 = vmatprep.subr.mxu0 %v899
        %953 = vmatpush1.msra.mxu0 %v898
        %954 = vmatprep.subr.mxu0 %v897
        %955 = vmatpush1.msra.mxu0 %v896
        %956 = vmatprep.subr.mxu0 %v895
        %957 = vmatpush1.msra.mxu0 %v894
        %958 = vmatprep.subr.mxu0 0.0
        %959 = vmatpush2.msra.mxu0 0.0
        %960 = vmatprep.subr.mxu0 0.0
        %961 = vmatpush2.msra.mxu0 0.0
        %962 = vmatprep.subr.mxu0 0.0
        %963 = vmatpush2.msra.mxu0 0.0
        %964 = vmatprep.subr.mxu0 0.0
        %965 = vmatpush2.msra.mxu0 0.0
        %966 = vmatprep.subr.mxu0 0.0
        %967 = vmatpush2.msra.mxu0 0.0
        %968 = vmatprep.subr.mxu0 0.0
        %969 = vmatpush2.msra.mxu0 0.0
        %970 = vmatprep.subr.mxu0 0.0
        %971 = vmatpush2.msra.mxu0 0.0
        %972 = vmatprep.subr.mxu0 0.0
        %973 = vmatpush2.msra.mxu0 0.0
        %974 = vmatprep.subr.mxu0 0.0
        %975 = vmatpush2.msra.mxu0 0.0
        %976 = vmatprep.subr.mxu0 0.0
        %977 = vmatpush2.msra.mxu0 0.0
        %978 = vmatprep.subr.mxu0 0.0
        %979 = vmatpush2.msra.mxu0 0.0
        %980 = vmatprep.subr.mxu0 0.0
        %981 = vmatpush2.msra.mxu0 0.0
        %982 = vmatprep.subr.mxu0 0.0
        %983 = vmatpush2.msra.mxu0 0.0
        %984 = vmatprep.subr.mxu0 0.0
        %985 = vmatpush2.msra.mxu0 0.0
        %986 = vmatprep.subr.mxu0 0.0
        %987 = vmatpush2.msra.mxu0 0.0
        %988 = vmatprep.subr.mxu0 0.0
        %989 = vmatpush2.msra.mxu0 0.0
        %990 = vmatprep.mubr.f32.mxu0 0.0
        %991 = vmatmul.mubr.f32.gmra.mxu0 %v924
        %v992 = vpop.f32.mrf.mxu0
        %v993 = vadd.f32 %v915, %v992
        %v994 = vpop.f32.mrf.mxu0
        %v995 = vadd.f32 %v919, %v994
        %996 = vdwg.mxu0
        %v999 = vcombine.low %v993, %v995
        %v1001 = vunpack.c.l.s4 1966171168
        %v1002 = vunpack.c.0.s8 %v1001
        %v1003 = vlaneseq
        %v1004 = vshrl.u32 %v1003, 7
        %v1005 = vsub.s32 %v1002, %v1004
        %v1006 = vrot.slane %v999, %v1005
        %v1008 = vunpack.c.l.s4 1966171168
        %v1009 = vunpack.c.0.s8 %v1008
        %v1010 = vlaneseq
        %v1011 = vshrl.u32 %v1010, 7
        %v1012 = vsub.s32 %v1009, %v1011
        %v1013 = vrot.slane %v1006, %v1012
        %v1015 = vlaneseq
        %vm1016 = vcmp.ge.s32.totalorder %v1015, 0
        %vm1017 = vcmp.lt.s32.totalorder %v1015, 256
        %vm1018 = vmand %vm1016, %vm1017
        %1019 = vst.msk [vmem:[%s457] sm:$0x3] %vm1018, %v1013
        %v1020 = vld [vmem:[#allocation3] sm:$0x1]
        %vm1021 = vcmask 1040384
        %v1022 = vsel %vm1021, %v993, -inf
        %v1023 = vsel %vm1021, %v995, -inf
        %v1024 = vmax.f32 %v1022, %v1023
        %1025 = vmax.xlane.f32.xlu0 %v1024
        %v1026 = vpop.xlane.xlu0 %1025
        %v1027 = vmax.f32 %v1020, %v1026
        %v1028 = vld [vmem:[#allocation4] sm:$0x1]
        %v1029 = vsub.f32 %v1020, %v1027
        %v1030 = vmul.f32 %v1029, 1.442695
        %v1031 = vpow.pop %v1030
        %v1032 = vmul.f32 %v1028, %v1031
        %1034 = vset.pattern.permute.xlu0 0
        %1035 = vperm.xlu0 %1034, %v1027
        %v1036 = vpop.permute.xlu0 %1035
        %v1038 = vlaneseq
        %v1039 = vshrl.u32 %v1038, 7
        %v1040 = vsub.s32 0, %v1039
        %v1041 = vrot.slane %v1036, %v1040
        %v1042 = vsub.f32 %v993, %v1041
        %v1043 = vsub.f32 %v995, %v1041
        %v1044 = vmul.f32 %v1042, 1.442695
        %v1045 = vpow.pop %v1044
        %v1046 = vmul.f32 %v1043, 1.442695
        %v1047 = vpow.pop %v1046
        %v1048 = vsel %vm1021, %v1045, 0.0
        %v1049 = vsel %vm1021, %v1047, 0.0
        %v1050 = vadd.f32 %v1048, %v1049
        %1051 = vadd.xlane.f32.xlu0 %v1050
        %v1052 = vpop.xlane.xlu0 %1051
        %v1053 = vadd.f32 %v1032, %v1052
        %vm1054 = vcmask 0
        %1055 = vst.msk [vmem:[#allocation4] sm:$0x1] %vm1054, %v1053
        %1056 = vst.msk [vmem:[#allocation3] sm:$0x1] %vm1054, %v1027
        %p1057 = scmp.eq.s32.totalorder %s30, 1
        // Predicated region
        $region65: #{step.1} parent=51 // pred_check
          %p1058 = pneg %p1057
        $region66: #{step.1} parent=51 // pred_check_branch
          %1060 = sbr.rel (%p1058) target = $region68
        $region67: #{step.1} parent=51 // pred_region
          %v1061 = vld [vmem:[#allocation3] sm:$0x1]
          %v1062 = vld [vmem:[#allocation4] sm:$0x1]
          %v1063 = vlog2.pop %v1062
          %v1064 = vmul.f32 %v1063, 0.6931472
          %v1065 = vadd.f32 %v1061, %v1064
          %1066 = vst.msk [vmem:[#allocation10] sm:$0x1] %vm1054, %v1065
        $region68: #{step.1} parent=51 // pred_fallthru
          _
        %s1067 = smul.u32 2, %s30
        %p1068 = scmp.lt.s32.totalorder %s1067, 3
        %s1069 = scalar_select %p1068, %s1067, 3
        %s1070 = scalar_lea.vmem %s8, %s1069
        // Predicated region
        $region69: #{step.1} parent=51 // pred_check
          %p1071 = pneg %p226
        $region70: #{step.1} parent=51 // pred_check_branch
          %1073 = sbr.rel (%p1071) target = $region72
        $region71: #{step.1} parent=51 // pred_region
          %s1074 = smul.u32 2, %s30
        $region72: #{step.1} parent=51 // pred_fallthru
          _
        // Predicated region
        $region73: #{step.1} parent=51 // pred_check
          %p1075 = pneg %p247
        $region74: #{step.1} parent=51 // pred_check_branch
          %1077 = sbr.rel (%p1075) target = $region76
        $region75: #{step.1} parent=51 // pred_region
          %s1079 = ssub.s32 16, 16
          %1080 = vsyncadd [#allocation7], %s1079
          %s1082 = sshll.u32 [#allocation10], 4
          %s1083 = int_to_ptr.vmem [resolvable:$true] %s1082
          %1085 = dma.vmem_to_hbm [thread:$0]  %s1083, 16, %s9, [#allocation7]
        $region76: #{step.1} parent=51 // pred_fallthru
          _
        // Predicated region
        $region77: #{step.1} parent=51 // pred_check
          %p1086 = pneg %p268
        $region78: #{step.1} parent=51 // pred_check_branch
          %1088 = sbr.rel (%p1086) target = $region80
        $region79: #{step.1} parent=51 // pred_region
          _
        $region80: #{step.1} parent=51 // pred_fallthru
          _
        // Predicated region
        $region81: #{step.1} parent=51 // pred_check
          %p1089 = pneg %p289
        $region82: #{step.1} parent=51 // pred_check_branch
          %1091 = sbr.rel (%p1089) target = $region84
        $region83: #{step.1} parent=51 // pred_region
          _
        $region84: #{step.1} parent=51 // pred_fallthru
          _
        // Predicated region
        $region85: #{step.1} parent=51 // pred_check
          %p1092 = pneg %p310
        $region86: #{step.1} parent=51 // pred_check_branch
          %1094 = sbr.rel (%p1092) target = $region88
        $region87: #{step.1} parent=51 // pred_region
          %s1096 = ssub.s32 16, 16
          %1097 = vsyncadd [#allocation12], %s1096
          %s1099 = sshll.u32 [#allocation11], 4
          %s1100 = int_to_ptr.vmem [resolvable:$true] %s1099
          %1102 = dma.vmem_to_hbm [thread:$0]  %s1100, 16, %s12, [#allocation12]
        $region88: #{step.1} parent=51 // pred_fallthru
          _
        // Predicated region
        $region89: #{step.1} parent=51 // pred_check
          %p1103 = pneg %p247
        $region90: #{step.1} parent=51 // pred_check_branch
          %1105 = sbr.rel (%p1103) target = $region92
        $region91: #{step.1} parent=51 // pred_region
          %1106 = dma.done [#allocation7], 16
        $region92: #{step.1} parent=51 // pred_fallthru
          _
        // Predicated region
        $region93: #{step.1} parent=51 // pred_check
          %p1107 = pneg %p268
        $region94: #{step.1} parent=51 // pred_check_branch
          %1109 = sbr.rel (%p1107) target = $region96
        $region95: #{step.1} parent=51 // pred_region
          _
        $region96: #{step.1} parent=51 // pred_fallthru
          _
        // Predicated region
        $region97: #{step.1} parent=51 // pred_check
          %p1110 = pneg %p289
        $region98: #{step.1} parent=51 // pred_check_branch
          %1112 = sbr.rel (%p1110) target = $region100
        $region99: #{step.1} parent=51 // pred_region
          _
        $region100: #{step.1} parent=51 // pred_fallthru
          _
        // Predicated region
        $region101: #{step.1} parent=51 // pred_check
          %p1113 = pneg %p310
        $region102: #{step.1} parent=51 // pred_check_branch
          %1115 = sbr.rel (%p1113) target = $region104
        $region103: #{step.1} parent=51 // pred_region
          %1116 = dma.done [#allocation12], 16
        $region104: #{step.1} parent=51 // pred_fallthru
          _
      $region52: #{step.1} parent=5 // pred_fallthru
        _
      %p1117 = scmp.le.s32.totalorder 2, %s25
      // Predicated region
      $region105: #{step.1} parent=5 // pred_check
        %p1118 = pneg %p1117
      $region106: #{step.1} parent=5 // pred_check_branch
        %1120 = sbr.rel (%p1118) target = $region108
      $region107: #{step.1} parent=5 // pred_region
        %s1121 = ssub.s32 %s25, 2
        // Predicated region
        $region109: #{step.1} parent=107 // pred_check
          %p1122 = pneg %p232
        $region110: #{step.1} parent=107 // pred_check_branch
          %1124 = sbr.rel (%p1122) target = $region112
        $region111: #{step.1} parent=107 // pred_region
          %s1125 = smul.u32 2, %s31
          %p1126 = scmp.lt.s32.totalorder %s1125, 3
          %s1127 = scalar_select %p1126, %s1125, 3
          %s1128 = scalar_lea.vmem %s8, %s1127
        $region112: #{step.1} parent=107 // pred_fallthru
          _
      $region108: #{step.1} parent=5 // pred_fallthru
        _
    $region6: #{step.1} parent=1 // loop_footer
      %s29 = sadd.s32 1, %s25
    $region7: #{step.1} parent=1 // loop_footer_branch
      %24 = sbr.rel target = $region3
    $region8: #{step.1} parent=1 // loop_exit
      _
    %1129 = vsyncpa [#allocation6], 1
    %s1130 = scalar_lea.sflag [#allocation6], 1
    %1131 = vsyncpa %s1130, 1
    %1132 = vsyncpa [#allocation9], 1
    %s1133 = scalar_lea.sflag [#allocation9], 1
    %1134 = vsyncpa %s1133, 1
    %1135 = vsyncpa [#allocation7], 1
    %s1136 = scalar_lea.sflag [#allocation7], 1
    %1137 = vsyncpa %s1136, 1
    %1138 = vsyncpa [#allocation12], 1

</llo_original>
